<compile_context>
chip_gen: v7x
topology: tpu7x:2x2x1
jax: 0.10.0
libtpu: 0.0.40
codegen_flags: <defaults>
</compile_context>

<pallas_src>
import numpy as np
from functools import partial

import jax
import jax.numpy as jnp
from jax import lax
from jax.experimental import pallas as pl
from jax.experimental.pallas import tpu as pltpu

EPS = 1e-5
H, W = 5, 5                        # imSize
P = H * W                          # 25 real pixels
ROWS = 32                          # padded spatial rows (sublane axis)
ZPAD = 8                           # zero rows above/below for the pad+slice fallback
N_NEURONS = 10
STEPS = 5
MAX_BLOCK_B = 1024                 # max batch lanes per grid step

TAPS = tuple((di, dj) for di in (-1, 0, 1) for dj in (-1, 0, 1))   # 3x3 taps, torch flatten order
TAP_SHIFTS = tuple(di * W + dj for (di, dj) in TAPS)               # flattened-row shift per tap
NEIGHBORS = ((1, 0), (0, 1), (-1, 0), (0, -1))                     # self.neighbors
NEIGHBOR_TAP = tuple(TAPS.index(nb) for nb in NEIGHBORS)           # tap index of each neighbor
_PREC = lax.Precision.HIGHEST                                      # XLA reference only


def _round_up(a, m):
    return -(-a // m) * m


def _tap_masks_np():
    """(9, 32) 0/1 masks: mask[k, r] = 1 iff pixel r shifted by tap k stays in bounds."""
    r = np.arange(ROWS)
    i, j = r // W, r % W
    valid = r < P
    out = []
    for (di, dj) in TAPS:
        ok = valid & (i + di >= 0) & (i + di < H) & (j + dj >= 0) & (j + dj < W)
        out.append(ok.astype(np.float32))
    return np.stack(out)


# -----------------------------------------------------------------------------
# Sublane shift: pltpu.roll (XLU) when available, aligned pad+slice fallback.
# -----------------------------------------------------------------------------
_ROLL_MODE_CACHE = None            # +1: pltpu.roll == jnp.roll, -1: opposite, 0: fallback


def _probe_roll_kernel(x_ref, o_ref):
    o_ref[...] = pltpu.roll(x_ref[...], 1, 0)


def _roll_mode():
    """Detect (once, outside jit) whether / with which direction pltpu.roll works on sublanes."""
    global _ROLL_MODE_CACHE
    if _ROLL_MODE_CACHE is None:
        mode = 0
        try:
            rows = jnp.tile(jnp.arange(ROWS, dtype=jnp.float32)[:, None], (1, 128))
            y = pl.pallas_call(
                _probe_roll_kernel,
                out_shape=jax.ShapeDtypeStruct((ROWS, 128), jnp.float32),
            )(rows)
            v = int(jax.device_get(y)[1, 0])
            if v == 0:
                mode = 1           # out[r] = in[(r - shift) % n]  (jnp.roll semantics)
            elif v == 2:
                mode = -1          # out[r] = in[(r + shift) % n]
        except Exception:
            mode = 0               # sublane roll unsupported -> pad+slice fallback
        _ROLL_MODE_CACHE = mode
    return _ROLL_MODE_CACHE


def _zpad_rows(a):
    """Zero-pad ZPAD rows above/below (aligned concat along sublanes) — fallback path only."""
    z = jnp.zeros((ZPAD, a.shape[1]), a.dtype)
    return jnp.concatenate([z, a, z], axis=0)


def _make_shifter(a, roll_mode):
    """Return fn s -> array whose row r holds a[r + s] on every mask-valid row."""
    if roll_mode != 0:
        def sh(s):
            k = ((-roll_mode) * s) % ROWS
            return a if k == 0 else pltpu.roll(a, k, 0)
        return sh
    ap = _zpad_rows(a)

    def sh(s):
        return ap[ZPAD + s:ZPAD + s + ROWS]
    return sh


# -----------------------------------------------------------------------------
# Kernel
# -----------------------------------------------------------------------------
def _make_kernel(roll_mode):
    def kernel(x_ref, noise_ref, masks_ref, decb_ref,          # VMEM blocks
               w_enc_ref, b_enc_ref, w_dec_ref,                # SMEM scalars
               xrec_ref, mu_ref, nlogprec_ref, coup_ref):      # VMEM outputs
        x = x_ref[...]                                         # (ROWS, TB)
        shape = x.shape

        # Per-row 0/1 tap masks, broadcast across lanes ONCE per block (no per-use broadcasts).
        m = [jnp.broadcast_to(masks_ref[k], shape) for k in range(9)]

        # ---------------- encode: folded 3x3 conv -> 6 heads (mu, prec, 4x coupling) ----------------
        shx = _make_shifter(x, roll_mode)
        xs = m[0] * shx(TAP_SHIFTS[0])
        heads = [w_enc_ref[h, 0] * xs for h in range(6)]       # init from tap 0 (no zeros + add)
        for k in range(1, 9):
            xs = m[k] * shx(TAP_SHIFTS[k])
            for h in range(6):
                heads[h] = heads[h] + w_enc_ref[h, k] * xs

        mu = heads[0] + b_enc_ref[0]
        prec = jnp.maximum(heads[1] + b_enc_ref[1], 0.0) + EPS
        coup = [jnp.maximum(heads[2 + o] + b_enc_ref[2 + o], 0.0) for o in range(4)]

        mu_ref[...] = mu
        nlogprec_ref[...] = -jnp.log(prec)
        for o in range(4):
            coup_ref[o] = coup[o]

        # ---------------- reparametrize: Gibbs sampling ----------------
        z = mu + noise_ref[0] * lax.rsqrt(prec)
        prec_new = coup[0] + coup[1] + coup[2] + coup[3] + prec
        inv_std_new = lax.rsqrt(prec_new)                      # EUP, hoisted out of the loop
        inv_prec_new = inv_std_new * inv_std_new               # replaces exact reciprocal (1 vmul)
        prec_mu = prec * mu
        coup_m = [coup[k] * m[NEIGHBOR_TAP[k]] for k in range(4)]   # masks hoisted out of the loop
        for s in range(STEPS):
            shz = _make_shifter(z, roll_mode)
            mu_new = prec_mu
            for k in range(4):
                mu_new = mu_new + coup_m[k] * shz(TAP_SHIFTS[NEIGHBOR_TAP[k]])
            z = mu_new * inv_prec_new + noise_ref[s + 1] * inv_std_new

        # ---------------- decode: conv_dec1 (1x1) folded into conv_dec2 (3x3) ----------------
        shz = _make_shifter(z, roll_mode)
        xrec = decb_ref[...] + w_dec_ref[0] * (m[0] * shz(TAP_SHIFTS[0]))
        for k in range(1, 9):
            xrec = xrec + w_dec_ref[k] * (m[k] * shz(TAP_SHIFTS[k]))
        xrec_ref[...] = xrec

    return kernel


# -----------------------------------------------------------------------------
# Params / wrapper
# -----------------------------------------------------------------------------
def make_params(key, n_neurons=N_NEURONS):
    """Deterministic init mirroring the torch module: xavier_uniform conv weights, zero biases."""
    ks = jax.random.split(key, 6)

    def xavier(k, shape, fan_in, fan_out):
        bound = (6.0 / (fan_in + fan_out)) ** 0.5
        return jax.random.uniform(k, shape, jnp.float32, -bound, bound)

    return dict(
        w_enc=xavier(ks[0], (n_neurons, 1, 3, 3), 1 * 9, n_neurons * 9),
        b_enc=jnp.zeros((n_neurons,), jnp.float32),
        w_mu=xavier(ks[1], (1, n_neurons, 1, 1), n_neurons, 1),
        b_mu=jnp.zeros((1,), jnp.float32),
        w_prec=xavier(ks[2], (1, n_neurons, 1, 1), n_neurons, 1),
        b_prec=jnp.zeros((1,), jnp.float32),
        w_coup=xavier(ks[3], (4, n_neurons, 1, 1), n_neurons, 4),
        b_coup=jnp.zeros((4,), jnp.float32),
        w_d1=xavier(ks[4], (n_neurons, 1, 1, 1), 1, n_neurons),
        b_d1=jnp.zeros((n_neurons,), jnp.float32),
        w_d2=xavier(ks[5], (1, n_neurons, 3, 3), n_neurons * 9, 1 * 9),
        b_d2=jnp.zeros((1,), jnp.float32),
        log_var_final=jnp.zeros((), jnp.float32),
    )


def minimal_gibbs_forward(params, x, noise):
    """x: (..., 1, 5, 5) or (..., 25); noise: (STEPS+1, B, 5, 5) std-normal draws."""
    return _forward_impl(_roll_mode(), params, x, noise)


@partial(jax.jit, static_argnums=0)
def _forward_impl(roll_mode, params, x, noise):
    x = x.reshape(-1, 1, H, W).astype(jnp.float32)
    B = x.shape[0]
    n = N_NEURONS

    # Batch tiling: up to MAX_BLOCK_B lanes per grid step, balanced blocks (>=2 when big).
    lanes = _round_up(max(B, 1), 128)
    nb = -(-lanes // MAX_BLOCK_B)
    block_b = _round_up(-(-lanes // nb), 128)
    B_pad = nb * block_b

    # Lane-dense relayout: spatial (25 -> 32) on sublanes, batch (padded) on lanes.
    # TODO(synk): for large B, surrounding code could adopt this (rows, lanes) layout directly
    # and skip the pad/transpose relayout below (it is HBM traffic comparable to the kernel IO).
    x_rows = jnp.pad(x.reshape(B, P).T, ((0, ROWS - P), (0, B_pad - B)))
    noise_rows = jnp.pad(
        jnp.transpose(noise.astype(jnp.float32).reshape(STEPS + 1, B, P), (0, 2, 1)),
        ((0, 0), (0, ROWS - P), (0, B_pad - B)))

    masks_np = _tap_masks_np()                                 # (9, 32) host constant
    masks_col = jnp.asarray(masks_np)[:, :, None]              # (9, 32, 1): broadcast in-kernel

    # ---- fold 1x1 heads into effective 3x3 taps (exact: ReLU applied after the 1x1) ----
    w_enc = params['w_enc'].reshape(n, 9)
    w_mu = params['w_mu'].reshape(n)
    w_prec = params['w_prec'].reshape(n)
    w_coup = params['w_coup'].reshape(4, n)
    b_enc = params['b_enc']

    w_enc_eff = jnp.concatenate([
        jnp.sum(w_mu[:, None] * w_enc, axis=0)[None, :],
        jnp.sum(w_prec[:, None] * w_enc, axis=0)[None, :],
        jnp.sum(w_coup[:, :, None] * w_enc[None, :, :], axis=1),
    ], axis=0).astype(jnp.float32)                             # (6, 9)
    b_enc_eff = jnp.concatenate([
        (jnp.sum(w_mu * b_enc) + params['b_mu'][0])[None],
        (jnp.sum(w_prec * b_enc) + params['b_prec'][0])[None],
        jnp.sum(w_coup * b_enc[None, :], axis=1) + params['b_coup'],
    ]).astype(jnp.float32)                                     # (6,)

    # ---- fold conv_dec1 (1x1) into conv_dec2 (3x3): weights + per-row bias column ----
    w_d1 = params['w_d1'].reshape(n)
    b_d1 = params['b_d1'].reshape(n)
    w_d2 = params['w_d2'].reshape(n, 9)
    w_dec_eff = jnp.sum(w_d1[:, None] * w_d2, axis=0).astype(jnp.float32)    # (9,)
    beta_dec = jnp.sum(b_d1[:, None] * w_d2, axis=0)                         # (9,)
    dec_bias_col = (params['b_d2'][0]
                    + jnp.sum(beta_dec[:, None] * jnp.asarray(masks_np), axis=0)
                    )[:, None].astype(jnp.float32)                           # (32, 1)

    smem = pltpu.MemorySpace.SMEM
    out_shape = (
        jax.ShapeDtypeStruct((ROWS, B_pad), jnp.float32),      # x_recon
        jax.ShapeDtypeStruct((ROWS, B_pad), jnp.float32),      # mu
        jax.ShapeDtypeStruct((ROWS, B_pad), jnp.float32),      # -log(prec)
        jax.ShapeDtypeStruct((4, ROWS, B_pad), jnp.float32),   # coupling (channel-major)
    )

    xrec, mu, nlogprec, coup = pl.pallas_call(
        _make_kernel(roll_mode),
        out_shape=out_shape,
        grid=(nb,),
        in_specs=[
            pl.BlockSpec((ROWS, block_b), lambda b: (0, b)),                 # x
            pl.BlockSpec((STEPS + 1, ROWS, block_b), lambda b: (0, 0, b)),   # noise
            pl.BlockSpec((9, ROWS, 1), lambda b: (0, 0, 0)),                 # per-row tap masks
            pl.BlockSpec((ROWS, 1), lambda b: (0, 0)),                       # decoder bias column
            pl.BlockSpec(memory_space=smem),                                 # folded enc weights (6,9)
            pl.BlockSpec(memory_space=smem),                                 # folded enc biases  (6,)
            pl.BlockSpec(memory_space=smem),                                 # folded dec weights (9,)
        ],
        out_specs=(
            pl.BlockSpec((ROWS, block_b), lambda b: (0, b)),
            pl.BlockSpec((ROWS, block_b), lambda b: (0, b)),
            pl.BlockSpec((ROWS, block_b), lambda b: (0, b)),
            pl.BlockSpec((4, ROWS, block_b), lambda b: (0, 0, b)),
        ),
        compiler_params=pltpu.CompilerParams(
            dimension_semantics=("parallel",),
            vmem_limit_bytes=32 * 1024 * 1024),
    )(x_rows, noise_rows, masks_col, dec_bias_col, w_enc_eff, b_enc_eff, w_dec_eff)

    # Back to NCHW (interface of the torch module).
    xrec = xrec[:P, :B].T.reshape(B, 1, H, W)
    mu = mu[:P, :B].T.reshape(B, 1, H, W)
    nlogprec = nlogprec[:P, :B].T.reshape(B, 1, H, W)
    coup = jnp.transpose(coup[:, :P, :B], (2, 0, 1)).reshape(B, 4, H, W)
    return xrec, mu, nlogprec, coup, params['log_var_final']


# -----------------------------------------------------------------------------
# Pure-JAX (XLA conv) reference with identical semantics, for verification.
# -----------------------------------------------------------------------------
def reference_forward(params, x, noise):
    x = x.reshape(-1, 1, H, W).astype(jnp.float32)

    def conv(inp, w, b, pad):
        out = lax.conv_general_dilated(
            inp, w, window_strides=(1, 1), padding=[(pad, pad), (pad, pad)],
            dimension_numbers=('NCHW', 'OIHW', 'NCHW'), precision=_PREC)
        return out + b.reshape(1, -1, 1, 1)

    f = conv(x, params['w_enc'], params['b_enc'], 1)
    mu = conv(f, params['w_mu'], params['b_mu'], 0)
    prec = jnp.maximum(conv(f, params['w_prec'], params['b_prec'], 0), 0.0) + EPS
    coupling = jnp.maximum(conv(f, params['w_coup'], params['b_coup'], 0), 0.0)

    z = mu + noise[0][:, None] / jnp.sqrt(prec)
    prec_new = jnp.sum(coupling, axis=1, keepdims=True) + prec
    for s in range(STEPS):
        z_pad = jnp.pad(z, ((0, 0), (0, 0), (1, 1), (1, 1)))
        mu_new = prec * mu
        for k, (di, dj) in enumerate(NEIGHBORS):
            mu_new = mu_new + coupling[:, k:k + 1] * \
                z_pad[:, :, 1 + di:H + 1 + di, 1 + dj:W + 1 + dj]
        mu_new = mu_new / prec_new
        z = mu_new + noise[s + 1][:, None] / jnp.sqrt(prec_new)

    fd = conv(z, params['w_d1'], params['b_d1'], 0)
    xr = conv(fd, params['w_d2'], params['b_d2'], 1)
    return xr, mu, -jnp.log(prec), coupling, params['log_var_final']


if __name__ == "__main__":
    key = jax.random.PRNGKey(0)
    k_par, k_x, k_noise = jax.random.split(key, 3)

    params = make_params(k_par)
    B = 2
    x = jax.random.normal(k_x, (B, 1, H, W), jnp.float32)                 # NCHW input
    noise = jax.random.normal(k_noise, (STEPS + 1, B, H, W), jnp.float32)

    outs = minimal_gibbs_forward(params, x, noise)
    jax.block_until_ready(outs)

    refs = reference_forward(params, x, noise)
    for o, r in zip(outs[:4], refs[:4]):
        assert o.shape == r.shape, (o.shape, r.shape)
        err = float(jnp.max(jnp.abs(o - r)))
        assert bool(jnp.allclose(o, r, rtol=1e-3, atol=1e-2)), err
    assert bool(jnp.all(jnp.isfinite(outs[0])))

    print("KERNEL_OK")
</pallas_src>

<mosaic_0001>
module attributes {stable_mosaic.version = 11 : i64} {
  func.func @_probe_roll_kernel(%arg0: memref<32x128xf32, #tpu.memory_space<vmem>>, %arg1: memref<32x128xf32, #tpu.memory_space<vmem>>) attributes {dimension_semantics = [], scalar_prefetch = 0 : i64, scratch_operands = 0 : i64, tpu.core_type = #tpu.core_type<tc>} {
    %c0 = arith.constant 0 : index
    %c0_0 = arith.constant 0 : index
    %0 = vector.load %arg0[%c0, %c0_0] : memref<32x128xf32, #tpu.memory_space<vmem>>, vector<32x128xf32>
    %c1_i32 = arith.constant 1 : i32
    %1 = tpu.dynamic_rotate %0 by %c1_i32 dim 0 : vector<32x128xf32>, i32 -> vector<32x128xf32>
    %c0_1 = arith.constant 0 : index
    %c0_2 = arith.constant 0 : index
    %2 = vector.load %arg1[%c0_1, %c0_2] : memref<32x128xf32, #tpu.memory_space<vmem>>, vector<32x128xf32>
    tpu.vector_store %arg1[%c0_1, %c0_2], %1 {strides = array<i32>} : memref<32x128xf32, #tpu.memory_space<vmem>>, vector<32x128xf32>,
    return
  }
}

module attributes {stable_mosaic.version = 11 : i64} {
  func.func @kernel(%arg0: i32, %arg1: memref<32x128xf32, #tpu.memory_space<vmem>>, %arg2: memref<6x32x128xf32, #tpu.memory_space<vmem>>, %arg3: memref<9x32x1xf32, #tpu.memory_space<vmem>>, %arg4: memref<32x1xf32, #tpu.memory_space<vmem>>, %arg5: memref<6x9xf32, #tpu.memory_space<smem>>, %arg6: memref<6xf32, #tpu.memory_space<smem>>, %arg7: memref<9xf32, #tpu.memory_space<smem>>, %arg8: memref<32x128xf32, #tpu.memory_space<vmem>>, %arg9: memref<32x128xf32, #tpu.memory_space<vmem>>, %arg10: memref<32x128xf32, #tpu.memory_space<vmem>>, %arg11: memref<4x32x128xf32, #tpu.memory_space<vmem>>) attributes {dimension_semantics = [#tpu.dimension_semantics<parallel>], iteration_bounds = array<i64: 1>, scalar_prefetch = 0 : i64, scratch_operands = 0 : i64, tpu.core_type = #tpu.core_type<tc>, window_params = [{transform_indices = @transform_0, window_bounds = array<i64: 32, 128>}, {transform_indices = @transform_1, window_bounds = array<i64: 6, 32, 128>}, {pipeline_mode = #tpu.pipeline_mode<synchronous>, transform_indices = @transform_2, window_bounds = array<i64: 9, 32, 1>}, {pipeline_mode = #tpu.pipeline_mode<synchronous>, transform_indices = @transform_3, window_bounds = array<i64: 32, 1>}, {transform_indices = @transform_4, window_bounds = array<i64: 6, 9>}, {transform_indices = @transform_5, window_bounds = array<i64: 6>}, {transform_indices = @transform_6, window_bounds = array<i64: 9>}, {transform_indices = @transform_7, window_bounds = array<i64: 32, 128>}, {transform_indices = @transform_8, window_bounds = array<i64: 32, 128>}, {transform_indices = @transform_9, window_bounds = array<i64: 32, 128>}, {transform_indices = @transform_10, window_bounds = array<i64: 4, 32, 128>}]} {
    %c0 = arith.constant 0 : index
    %c0_0 = arith.constant 0 : index
    %0 = vector.load %arg1[%c0, %c0_0] : memref<32x128xf32, #tpu.memory_space<vmem>>, vector<32x128xf32>
    %c0_1 = arith.constant 0 : index
    %c0_2 = arith.constant 0 : index
    %c0_3 = arith.constant 0 : index
    %1 = vector.load %arg3[%c0_1, %c0_2, %c0_3] : memref<9x32x1xf32, #tpu.memory_space<vmem>>, vector<1x32x1xf32>
    %2 = vector.shape_cast %1 : vector<1x32x1xf32> to vector<32x1xf32>
    %3 = vector.shape_cast %2 : vector<32x1xf32> to vector<32x1xf32>
    %4 = vector.broadcast %3 : vector<32x1xf32> to vector<32x128xf32>
    %c1 = arith.constant 1 : index
    %c0_4 = arith.constant 0 : index
    %c0_5 = arith.constant 0 : index
    %5 = vector.load %arg3[%c1, %c0_4, %c0_5] : memref<9x32x1xf32, #tpu.memory_space<vmem>>, vector<1x32x1xf32>
    %6 = vector.shape_cast %5 : vector<1x32x1xf32> to vector<32x1xf32>
    %7 = vector.shape_cast %6 : vector<32x1xf32> to vector<32x1xf32>
    %8 = vector.broadcast %7 : vector<32x1xf32> to vector<32x128xf32>
    %c2 = arith.constant 2 : index
    %c0_6 = arith.constant 0 : index
    %c0_7 = arith.constant 0 : index
    %9 = vector.load %arg3[%c2, %c0_6, %c0_7] : memref<9x32x1xf32, #tpu.memory_space<vmem>>, vector<1x32x1xf32>
    %10 = vector.shape_cast %9 : vector<1x32x1xf32> to vector<32x1xf32>
    %11 = vector.shape_cast %10 : vector<32x1xf32> to vector<32x1xf32>
    %12 = vector.broadcast %11 : vector<32x1xf32> to vector<32x128xf32>
    %c3 = arith.constant 3 : index
    %c0_8 = arith.constant 0 : index
    %c0_9 = arith.constant 0 : index
    %13 = vector.load %arg3[%c3, %c0_8, %c0_9] : memref<9x32x1xf32, #tpu.memory_space<vmem>>, vector<1x32x1xf32>
    %14 = vector.shape_cast %13 : vector<1x32x1xf32> to vector<32x1xf32>
    %15 = vector.shape_cast %14 : vector<32x1xf32> to vector<32x1xf32>
    %16 = vector.broadcast %15 : vector<32x1xf32> to vector<32x128xf32>
    %c4 = arith.constant 4 : index
    %c0_10 = arith.constant 0 : index
    %c0_11 = arith.constant 0 : index
    %17 = vector.load %arg3[%c4, %c0_10, %c0_11] : memref<9x32x1xf32, #tpu.memory_space<vmem>>, vector<1x32x1xf32>
    %18 = vector.shape_cast %17 : vector<1x32x1xf32> to vector<32x1xf32>
    %19 = vector.shape_cast %18 : vector<32x1xf32> to vector<32x1xf32>
    %20 = vector.broadcast %19 : vector<32x1xf32> to vector<32x128xf32>
    %c5 = arith.constant 5 : index
    %c0_12 = arith.constant 0 : index
    %c0_13 = arith.constant 0 : index
    %21 = vector.load %arg3[%c5, %c0_12, %c0_13] : memref<9x32x1xf32, #tpu.memory_space<vmem>>, vector<1x32x1xf32>
    %22 = vector.shape_cast %21 : vector<1x32x1xf32> to vector<32x1xf32>
    %23 = vector.shape_cast %22 : vector<32x1xf32> to vector<32x1xf32>
    %24 = vector.broadcast %23 : vector<32x1xf32> to vector<32x128xf32>
    %c6 = arith.constant 6 : index
    %c0_14 = arith.constant 0 : index
    %c0_15 = arith.constant 0 : index
    %25 = vector.load %arg3[%c6, %c0_14, %c0_15] : memref<9x32x1xf32, #tpu.memory_space<vmem>>, vector<1x32x1xf32>
    %26 = vector.shape_cast %25 : vector<1x32x1xf32> to vector<32x1xf32>
    %27 = vector.shape_cast %26 : vector<32x1xf32> to vector<32x1xf32>
    %28 = vector.broadcast %27 : vector<32x1xf32> to vector<32x128xf32>
    %c7 = arith.constant 7 : index
    %c0_16 = arith.constant 0 : index
    %c0_17 = arith.constant 0 : index
    %29 = vector.load %arg3[%c7, %c0_16, %c0_17] : memref<9x32x1xf32, #tpu.memory_space<vmem>>, vector<1x32x1xf32>
    %30 = vector.shape_cast %29 : vector<1x32x1xf32> to vector<32x1xf32>
    %31 = vector.shape_cast %30 : vector<32x1xf32> to vector<32x1xf32>
    %32 = vector.broadcast %31 : vector<32x1xf32> to vector<32x128xf32>
    %c8 = arith.constant 8 : index
    %c0_18 = arith.constant 0 : index
    %c0_19 = arith.constant 0 : index
    %33 = vector.load %arg3[%c8, %c0_18, %c0_19] : memref<9x32x1xf32, #tpu.memory_space<vmem>>, vector<1x32x1xf32>
    %34 = vector.shape_cast %33 : vector<1x32x1xf32> to vector<32x1xf32>
    %35 = vector.shape_cast %34 : vector<32x1xf32> to vector<32x1xf32>
    %36 = vector.broadcast %35 : vector<32x1xf32> to vector<32x128xf32>
    %cst = arith.constant 0.000000e+00 : f32
    %37 = vector.broadcast %cst : f32 to vector<8x128xf32>
    %38 = tpu.concatenate %37, %0, %37 in 0 : vector<8x128xf32>, vector<32x128xf32>, vector<8x128xf32> -> vector<48x128xf32>
    %39 = vector.extract_strided_slice %38 {offsets = [2, 0], sizes = [32, 128], strides = [1, 1]} : vector<48x128xf32> to vector<32x128xf32>
    %40 = arith.mulf %4, %39 : vector<32x128xf32>
    %c0_20 = arith.constant 0 : index
    %c0_21 = arith.constant 0 : index
    %41 = memref.load %arg5[%c0_20, %c0_21] : memref<6x9xf32, #tpu.memory_space<smem>>
    %42 = vector.broadcast %41 : f32 to vector<32x128xf32>
    %43 = arith.mulf %42, %40 : vector<32x128xf32>
    %c1_22 = arith.constant 1 : index
    %c0_23 = arith.constant 0 : index
    %44 = memref.load %arg5[%c1_22, %c0_23] : memref<6x9xf32, #tpu.memory_space<smem>>
    %45 = vector.broadcast %44 : f32 to vector<32x128xf32>
    %46 = arith.mulf %45, %40 : vector<32x128xf32>
    %c2_24 = arith.constant 2 : index
    %c0_25 = arith.constant 0 : index
    %47 = memref.load %arg5[%c2_24, %c0_25] : memref<6x9xf32, #tpu.memory_space<smem>>
    %48 = vector.broadcast %47 : f32 to vector<32x128xf32>
    %49 = arith.mulf %48, %40 : vector<32x128xf32>
    %c3_26 = arith.constant 3 : index
    %c0_27 = arith.constant 0 : index
    %50 = memref.load %arg5[%c3_26, %c0_27] : memref<6x9xf32, #tpu.memory_space<smem>>
    %51 = vector.broadcast %50 : f32 to vector<32x128xf32>
    %52 = arith.mulf %51, %40 : vector<32x128xf32>
    %c4_28 = arith.constant 4 : index
    %c0_29 = arith.constant 0 : index
    %53 = memref.load %arg5[%c4_28, %c0_29] : memref<6x9xf32, #tpu.memory_space<smem>>
    %54 = vector.broadcast %53 : f32 to vector<32x128xf32>
    %55 = arith.mulf %54, %40 : vector<32x128xf32>
    %c5_30 = arith.constant 5 : index
    %c0_31 = arith.constant 0 : index
    %56 = memref.load %arg5[%c5_30, %c0_31] : memref<6x9xf32, #tpu.memory_space<smem>>
    %57 = vector.broadcast %56 : f32 to vector<32x128xf32>
    %58 = arith.mulf %57, %40 : vector<32x128xf32>
    %59 = vector.extract_strided_slice %38 {offsets = [3, 0], sizes = [32, 128], strides = [1, 1]} : vector<48x128xf32> to vector<32x128xf32>
    %60 = arith.mulf %8, %59 : vector<32x128xf32>
    %c0_32 = arith.constant 0 : index
    %c1_33 = arith.constant 1 : index
    %61 = memref.load %arg5[%c0_32, %c1_33] : memref<6x9xf32, #tpu.memory_space<smem>>
    %62 = vector.broadcast %61 : f32 to vector<32x128xf32>
    %63 = arith.mulf %62, %60 : vector<32x128xf32>
    %64 = arith.addf %43, %63 : vector<32x128xf32>
    %c1_34 = arith.constant 1 : index
    %c1_35 = arith.constant 1 : index
    %65 = memref.load %arg5[%c1_34, %c1_35] : memref<6x9xf32, #tpu.memory_space<smem>>
    %66 = vector.broadcast %65 : f32 to vector<32x128xf32>
    %67 = arith.mulf %66, %60 : vector<32x128xf32>
    %68 = arith.addf %46, %67 : vector<32x128xf32>
    %c2_36 = arith.constant 2 : index
    %c1_37 = arith.constant 1 : index
    %69 = memref.load %arg5[%c2_36, %c1_37] : memref<6x9xf32, #tpu.memory_space<smem>>
    %70 = vector.broadcast %69 : f32 to vector<32x128xf32>
    %71 = arith.mulf %70, %60 : vector<32x128xf32>
    %72 = arith.addf %49, %71 : vector<32x128xf32>
    %c3_38 = arith.constant 3 : index
    %c1_39 = arith.constant 1 : index
    %73 = memref.load %arg5[%c3_38, %c1_39] : memref<6x9xf32, #tpu.memory_space<smem>>
    %74 = vector.broadcast %73 : f32 to vector<32x128xf32>
    %75 = arith.mulf %74, %60 : vector<32x128xf32>
    %76 = arith.addf %52, %75 : vector<32x128xf32>
    %c4_40 = arith.constant 4 : index
    %c1_41 = arith.constant 1 : index
    %77 = memref.load %arg5[%c4_40, %c1_41] : memref<6x9xf32, #tpu.memory_space<smem>>
    %78 = vector.broadcast %77 : f32 to vector<32x128xf32>
    %79 = arith.mulf %78, %60 : vector<32x128xf32>
    %80 = arith.addf %55, %79 : vector<32x128xf32>
    %c5_42 = arith.constant 5 : index
    %c1_43 = arith.constant 1 : index
    %81 = memref.load %arg5[%c5_42, %c1_43] : memref<6x9xf32, #tpu.memory_space<smem>>
    %82 = vector.broadcast %81 : f32 to vector<32x128xf32>
    %83 = arith.mulf %82, %60 : vector<32x128xf32>
    %84 = arith.addf %58, %83 : vector<32x128xf32>
    %85 = vector.extract_strided_slice %38 {offsets = [4, 0], sizes = [32, 128], strides = [1, 1]} : vector<48x128xf32> to vector<32x128xf32>
    %86 = arith.mulf %12, %85 : vector<32x128xf32>
    %c0_44 = arith.constant 0 : index
    %c2_45 = arith.constant 2 : index
    %87 = memref.load %arg5[%c0_44, %c2_45] : memref<6x9xf32, #tpu.memory_space<smem>>
    %88 = vector.broadcast %87 : f32 to vector<32x128xf32>
    %89 = arith.mulf %88, %86 : vector<32x128xf32>
    %90 = arith.addf %64, %89 : vector<32x128xf32>
    %c1_46 = arith.constant 1 : index
    %c2_47 = arith.constant 2 : index
    %91 = memref.load %arg5[%c1_46, %c2_47] : memref<6x9xf32, #tpu.memory_space<smem>>
    %92 = vector.broadcast %91 : f32 to vector<32x128xf32>
    %93 = arith.mulf %92, %86 : vector<32x128xf32>
    %94 = arith.addf %68, %93 : vector<32x128xf32>
    %c2_48 = arith.constant 2 : index
    %c2_49 = arith.constant 2 : index
    %95 = memref.load %arg5[%c2_48, %c2_49] : memref<6x9xf32, #tpu.memory_space<smem>>
    %96 = vector.broadcast %95 : f32 to vector<32x128xf32>
    %97 = arith.mulf %96, %86 : vector<32x128xf32>
    %98 = arith.addf %72, %97 : vector<32x128xf32>
    %c3_50 = arith.constant 3 : index
    %c2_51 = arith.constant 2 : index
    %99 = memref.load %arg5[%c3_50, %c2_51] : memref<6x9xf32, #tpu.memory_space<smem>>
    %100 = vector.broadcast %99 : f32 to vector<32x128xf32>
    %101 = arith.mulf %100, %86 : vector<32x128xf32>
    %102 = arith.addf %76, %101 : vector<32x128xf32>
    %c4_52 = arith.constant 4 : index
    %c2_53 = arith.constant 2 : index
    %103 = memref.load %arg5[%c4_52, %c2_53] : memref<6x9xf32, #tpu.memory_space<smem>>
    %104 = vector.broadcast %103 : f32 to vector<32x128xf32>
    %105 = arith.mulf %104, %86 : vector<32x128xf32>
    %106 = arith.addf %80, %105 : vector<32x128xf32>
    %c5_54 = arith.constant 5 : index
    %c2_55 = arith.constant 2 : index
    %107 = memref.load %arg5[%c5_54, %c2_55] : memref<6x9xf32, #tpu.memory_space<smem>>
    %108 = vector.broadcast %107 : f32 to vector<32x128xf32>
    %109 = arith.mulf %108, %86 : vector<32x128xf32>
    %110 = arith.addf %84, %109 : vector<32x128xf32>
    %111 = vector.extract_strided_slice %38 {offsets = [7, 0], sizes = [32, 128], strides = [1, 1]} : vector<48x128xf32> to vector<32x128xf32>
    %112 = arith.mulf %16, %111 : vector<32x128xf32>
    %c0_56 = arith.constant 0 : index
    %c3_57 = arith.constant 3 : index
    %113 = memref.load %arg5[%c0_56, %c3_57] : memref<6x9xf32, #tpu.memory_space<smem>>
    %114 = vector.broadcast %113 : f32 to vector<32x128xf32>
    %115 = arith.mulf %114, %112 : vector<32x128xf32>
    %116 = arith.addf %90, %115 : vector<32x128xf32>
    %c1_58 = arith.constant 1 : index
    %c3_59 = arith.constant 3 : index
    %117 = memref.load %arg5[%c1_58, %c3_59] : memref<6x9xf32, #tpu.memory_space<smem>>
    %118 = vector.broadcast %117 : f32 to vector<32x128xf32>
    %119 = arith.mulf %118, %112 : vector<32x128xf32>
    %120 = arith.addf %94, %119 : vector<32x128xf32>
    %c2_60 = arith.constant 2 : index
    %c3_61 = arith.constant 3 : index
    %121 = memref.load %arg5[%c2_60, %c3_61] : memref<6x9xf32, #tpu.memory_space<smem>>
    %122 = vector.broadcast %121 : f32 to vector<32x128xf32>
    %123 = arith.mulf %122, %112 : vector<32x128xf32>
    %124 = arith.addf %98, %123 : vector<32x128xf32>
    %c3_62 = arith.constant 3 : index
    %c3_63 = arith.constant 3 : index
    %125 = memref.load %arg5[%c3_62, %c3_63] : memref<6x9xf32, #tpu.memory_space<smem>>
    %126 = vector.broadcast %125 : f32 to vector<32x128xf32>
    %127 = arith.mulf %126, %112 : vector<32x128xf32>
    %128 = arith.addf %102, %127 : vector<32x128xf32>
    %c4_64 = arith.constant 4 : index
    %c3_65 = arith.constant 3 : index
    %129 = memref.load %arg5[%c4_64, %c3_65] : memref<6x9xf32, #tpu.memory_space<smem>>
    %130 = vector.broadcast %129 : f32 to vector<32x128xf32>
    %131 = arith.mulf %130, %112 : vector<32x128xf32>
    %132 = arith.addf %106, %131 : vector<32x128xf32>
    %c5_66 = arith.constant 5 : index
    %c3_67 = arith.constant 3 : index
    %133 = memref.load %arg5[%c5_66, %c3_67] : memref<6x9xf32, #tpu.memory_space<smem>>
    %134 = vector.broadcast %133 : f32 to vector<32x128xf32>
    %135 = arith.mulf %134, %112 : vector<32x128xf32>
    %136 = arith.addf %110, %135 : vector<32x128xf32>
    %137 = vector.extract_strided_slice %38 {offsets = [8, 0], sizes = [32, 128], strides = [1, 1]} : vector<48x128xf32> to vector<32x128xf32>
    %138 = arith.mulf %20, %137 : vector<32x128xf32>
    %c0_68 = arith.constant 0 : index
    %c4_69 = arith.constant 4 : index
    %139 = memref.load %arg5[%c0_68, %c4_69] : memref<6x9xf32, #tpu.memory_space<smem>>
    %140 = vector.broadcast %139 : f32 to vector<32x128xf32>
    %141 = arith.mulf %140, %138 : vector<32x128xf32>
    %142 = arith.addf %116, %141 : vector<32x128xf32>
    %c1_70 = arith.constant 1 : index
    %c4_71 = arith.constant 4 : index
    %143 = memref.load %arg5[%c1_70, %c4_71] : memref<6x9xf32, #tpu.memory_space<smem>>
    %144 = vector.broadcast %143 : f32 to vector<32x128xf32>
    %145 = arith.mulf %144, %138 : vector<32x128xf32>
    %146 = arith.addf %120, %145 : vector<32x128xf32>
    %c2_72 = arith.constant 2 : index
    %c4_73 = arith.constant 4 : index
    %147 = memref.load %arg5[%c2_72, %c4_73] : memref<6x9xf32, #tpu.memory_space<smem>>
    %148 = vector.broadcast %147 : f32 to vector<32x128xf32>
    %149 = arith.mulf %148, %138 : vector<32x128xf32>
    %150 = arith.addf %124, %149 : vector<32x128xf32>
    %c3_74 = arith.constant 3 : index
    %c4_75 = arith.constant 4 : index
    %151 = memref.load %arg5[%c3_74, %c4_75] : memref<6x9xf32, #tpu.memory_space<smem>>
    %152 = vector.broadcast %151 : f32 to vector<32x128xf32>
    %153 = arith.mulf %152, %138 : vector<32x128xf32>
    %154 = arith.addf %128, %153 : vector<32x128xf32>
    %c4_76 = arith.constant 4 : index
    %c4_77 = arith.constant 4 : index
    %155 = memref.load %arg5[%c4_76, %c4_77] : memref<6x9xf32, #tpu.memory_space<smem>>
    %156 = vector.broadcast %155 : f32 to vector<32x128xf32>
    %157 = arith.mulf %156, %138 : vector<32x128xf32>
    %158 = arith.addf %132, %157 : vector<32x128xf32>
    %c5_78 = arith.constant 5 : index
    %c4_79 = arith.constant 4 : index
    %159 = memref.load %arg5[%c5_78, %c4_79] : memref<6x9xf32, #tpu.memory_space<smem>>
    %160 = vector.broadcast %159 : f32 to vector<32x128xf32>
    %161 = arith.mulf %160, %138 : vector<32x128xf32>
    %162 = arith.addf %136, %161 : vector<32x128xf32>
    %163 = vector.extract_strided_slice %38 {offsets = [9, 0], sizes = [32, 128], strides = [1, 1]} : vector<48x128xf32> to vector<32x128xf32>
    %164 = arith.mulf %24, %163 : vector<32x128xf32>
    %c0_80 = arith.constant 0 : index
    %c5_81 = arith.constant 5 : index
    %165 = memref.load %arg5[%c0_80, %c5_81] : memref<6x9xf32, #tpu.memory_space<smem>>
    %166 = vector.broadcast %165 : f32 to vector<32x128xf32>
    %167 = arith.mulf %166, %164 : vector<32x128xf32>
    %168 = arith.addf %142, %167 : vector<32x128xf32>
    %c1_82 = arith.constant 1 : index
    %c5_83 = arith.constant 5 : index
    %169 = memref.load %arg5[%c1_82, %c5_83] : memref<6x9xf32, #tpu.memory_space<smem>>
    %170 = vector.broadcast %169 : f32 to vector<32x128xf32>
    %171 = arith.mulf %170, %164 : vector<32x128xf32>
    %172 = arith.addf %146, %171 : vector<32x128xf32>
    %c2_84 = arith.constant 2 : index
    %c5_85 = arith.constant 5 : index
    %173 = memref.load %arg5[%c2_84, %c5_85] : memref<6x9xf32, #tpu.memory_space<smem>>
    %174 = vector.broadcast %173 : f32 to vector<32x128xf32>
    %175 = arith.mulf %174, %164 : vector<32x128xf32>
    %176 = arith.addf %150, %175 : vector<32x128xf32>
    %c3_86 = arith.constant 3 : index
    %c5_87 = arith.constant 5 : index
    %177 = memref.load %arg5[%c3_86, %c5_87] : memref<6x9xf32, #tpu.memory_space<smem>>
    %178 = vector.broadcast %177 : f32 to vector<32x128xf32>
    %179 = arith.mulf %178, %164 : vector<32x128xf32>
    %180 = arith.addf %154, %179 : vector<32x128xf32>
    %c4_88 = arith.constant 4 : index
    %c5_89 = arith.constant 5 : index
    %181 = memref.load %arg5[%c4_88, %c5_89] : memref<6x9xf32, #tpu.memory_space<smem>>
    %182 = vector.broadcast %181 : f32 to vector<32x128xf32>
    %183 = arith.mulf %182, %164 : vector<32x128xf32>
    %184 = arith.addf %158, %183 : vector<32x128xf32>
    %c5_90 = arith.constant 5 : index
    %c5_91 = arith.constant 5 : index
    %185 = memref.load %arg5[%c5_90, %c5_91] : memref<6x9xf32, #tpu.memory_space<smem>>
    %186 = vector.broadcast %185 : f32 to vector<32x128xf32>
    %187 = arith.mulf %186, %164 : vector<32x128xf32>
    %188 = arith.addf %162, %187 : vector<32x128xf32>
    %189 = vector.extract_strided_slice %38 {offsets = [12, 0], sizes = [32, 128], strides = [1, 1]} : vector<48x128xf32> to vector<32x128xf32>
    %190 = arith.mulf %28, %189 : vector<32x128xf32>
    %c0_92 = arith.constant 0 : index
    %c6_93 = arith.constant 6 : index
    %191 = memref.load %arg5[%c0_92, %c6_93] : memref<6x9xf32, #tpu.memory_space<smem>>
    %192 = vector.broadcast %191 : f32 to vector<32x128xf32>
    %193 = arith.mulf %192, %190 : vector<32x128xf32>
    %194 = arith.addf %168, %193 : vector<32x128xf32>
    %c1_94 = arith.constant 1 : index
    %c6_95 = arith.constant 6 : index
    %195 = memref.load %arg5[%c1_94, %c6_95] : memref<6x9xf32, #tpu.memory_space<smem>>
    %196 = vector.broadcast %195 : f32 to vector<32x128xf32>
    %197 = arith.mulf %196, %190 : vector<32x128xf32>
    %198 = arith.addf %172, %197 : vector<32x128xf32>
    %c2_96 = arith.constant 2 : index
    %c6_97 = arith.constant 6 : index
    %199 = memref.load %arg5[%c2_96, %c6_97] : memref<6x9xf32, #tpu.memory_space<smem>>
    %200 = vector.broadcast %199 : f32 to vector<32x128xf32>
    %201 = arith.mulf %200, %190 : vector<32x128xf32>
    %202 = arith.addf %176, %201 : vector<32x128xf32>
    %c3_98 = arith.constant 3 : index
    %c6_99 = arith.constant 6 : index
    %203 = memref.load %arg5[%c3_98, %c6_99] : memref<6x9xf32, #tpu.memory_space<smem>>
    %204 = vector.broadcast %203 : f32 to vector<32x128xf32>
    %205 = arith.mulf %204, %190 : vector<32x128xf32>
    %206 = arith.addf %180, %205 : vector<32x128xf32>
    %c4_100 = arith.constant 4 : index
    %c6_101 = arith.constant 6 : index
    %207 = memref.load %arg5[%c4_100, %c6_101] : memref<6x9xf32, #tpu.memory_space<smem>>
    %208 = vector.broadcast %207 : f32 to vector<32x128xf32>
    %209 = arith.mulf %208, %190 : vector<32x128xf32>
    %210 = arith.addf %184, %209 : vector<32x128xf32>
    %c5_102 = arith.constant 5 : index
    %c6_103 = arith.constant 6 : index
    %211 = memref.load %arg5[%c5_102, %c6_103] : memref<6x9xf32, #tpu.memory_space<smem>>
    %212 = vector.broadcast %211 : f32 to vector<32x128xf32>
    %213 = arith.mulf %212, %190 : vector<32x128xf32>
    %214 = arith.addf %188, %213 : vector<32x128xf32>
    %215 = vector.extract_strided_slice %38 {offsets = [13, 0], sizes = [32, 128], strides = [1, 1]} : vector<48x128xf32> to vector<32x128xf32>
    %216 = arith.mulf %32, %215 : vector<32x128xf32>
    %c0_104 = arith.constant 0 : index
    %c7_105 = arith.constant 7 : index
    %217 = memref.load %arg5[%c0_104, %c7_105] : memref<6x9xf32, #tpu.memory_space<smem>>
    %218 = vector.broadcast %217 : f32 to vector<32x128xf32>
    %219 = arith.mulf %218, %216 : vector<32x128xf32>
    %220 = arith.addf %194, %219 : vector<32x128xf32>
    %c1_106 = arith.constant 1 : index
    %c7_107 = arith.constant 7 : index
    %221 = memref.load %arg5[%c1_106, %c7_107] : memref<6x9xf32, #tpu.memory_space<smem>>
    %222 = vector.broadcast %221 : f32 to vector<32x128xf32>
    %223 = arith.mulf %222, %216 : vector<32x128xf32>
    %224 = arith.addf %198, %223 : vector<32x128xf32>
    %c2_108 = arith.constant 2 : index
    %c7_109 = arith.constant 7 : index
    %225 = memref.load %arg5[%c2_108, %c7_109] : memref<6x9xf32, #tpu.memory_space<smem>>
    %226 = vector.broadcast %225 : f32 to vector<32x128xf32>
    %227 = arith.mulf %226, %216 : vector<32x128xf32>
    %228 = arith.addf %202, %227 : vector<32x128xf32>
    %c3_110 = arith.constant 3 : index
    %c7_111 = arith.constant 7 : index
    %229 = memref.load %arg5[%c3_110, %c7_111] : memref<6x9xf32, #tpu.memory_space<smem>>
    %230 = vector.broadcast %229 : f32 to vector<32x128xf32>
    %231 = arith.mulf %230, %216 : vector<32x128xf32>
    %232 = arith.addf %206, %231 : vector<32x128xf32>
    %c4_112 = arith.constant 4 : index
    %c7_113 = arith.constant 7 : index
    %233 = memref.load %arg5[%c4_112, %c7_113] : memref<6x9xf32, #tpu.memory_space<smem>>
    %234 = vector.broadcast %233 : f32 to vector<32x128xf32>
    %235 = arith.mulf %234, %216 : vector<32x128xf32>
    %236 = arith.addf %210, %235 : vector<32x128xf32>
    %c5_114 = arith.constant 5 : index
    %c7_115 = arith.constant 7 : index
    %237 = memref.load %arg5[%c5_114, %c7_115] : memref<6x9xf32, #tpu.memory_space<smem>>
    %238 = vector.broadcast %237 : f32 to vector<32x128xf32>
    %239 = arith.mulf %238, %216 : vector<32x128xf32>
    %240 = arith.addf %214, %239 : vector<32x128xf32>
    %241 = vector.extract_strided_slice %38 {offsets = [14, 0], sizes = [32, 128], strides = [1, 1]} : vector<48x128xf32> to vector<32x128xf32>
    %242 = arith.mulf %36, %241 : vector<32x128xf32>
    %c0_116 = arith.constant 0 : index
    %c8_117 = arith.constant 8 : index
    %243 = memref.load %arg5[%c0_116, %c8_117] : memref<6x9xf32, #tpu.memory_space<smem>>
    %244 = vector.broadcast %243 : f32 to vector<32x128xf32>
    %245 = arith.mulf %244, %242 : vector<32x128xf32>
    %246 = arith.addf %220, %245 : vector<32x128xf32>
    %c1_118 = arith.constant 1 : index
    %c8_119 = arith.constant 8 : index
    %247 = memref.load %arg5[%c1_118, %c8_119] : memref<6x9xf32, #tpu.memory_space<smem>>
    %248 = vector.broadcast %247 : f32 to vector<32x128xf32>
    %249 = arith.mulf %248, %242 : vector<32x128xf32>
    %250 = arith.addf %224, %249 : vector<32x128xf32>
    %c2_120 = arith.constant 2 : index
    %c8_121 = arith.constant 8 : index
    %251 = memref.load %arg5[%c2_120, %c8_121] : memref<6x9xf32, #tpu.memory_space<smem>>
    %252 = vector.broadcast %251 : f32 to vector<32x128xf32>
    %253 = arith.mulf %252, %242 : vector<32x128xf32>
    %254 = arith.addf %228, %253 : vector<32x128xf32>
    %c3_122 = arith.constant 3 : index
    %c8_123 = arith.constant 8 : index
    %255 = memref.load %arg5[%c3_122, %c8_123] : memref<6x9xf32, #tpu.memory_space<smem>>
    %256 = vector.broadcast %255 : f32 to vector<32x128xf32>
    %257 = arith.mulf %256, %242 : vector<32x128xf32>
    %258 = arith.addf %232, %257 : vector<32x128xf32>
    %c4_124 = arith.constant 4 : index
    %c8_125 = arith.constant 8 : index
    %259 = memref.load %arg5[%c4_124, %c8_125] : memref<6x9xf32, #tpu.memory_space<smem>>
    %260 = vector.broadcast %259 : f32 to vector<32x128xf32>
    %261 = arith.mulf %260, %242 : vector<32x128xf32>
    %262 = arith.addf %236, %261 : vector<32x128xf32>
    %c5_126 = arith.constant 5 : index
    %c8_127 = arith.constant 8 : index
    %263 = memref.load %arg5[%c5_126, %c8_127] : memref<6x9xf32, #tpu.memory_space<smem>>
    %264 = vector.broadcast %263 : f32 to vector<32x128xf32>
    %265 = arith.mulf %264, %242 : vector<32x128xf32>
    %266 = arith.addf %240, %265 : vector<32x128xf32>
    %c0_128 = arith.constant 0 : index
    %267 = memref.load %arg6[%c0_128] : memref<6xf32, #tpu.memory_space<smem>>
    %268 = vector.broadcast %267 : f32 to vector<32x128xf32>
    %269 = arith.addf %246, %268 : vector<32x128xf32>
    %c1_129 = arith.constant 1 : index
    %270 = memref.load %arg6[%c1_129] : memref<6xf32, #tpu.memory_space<smem>>
    %271 = vector.broadcast %270 : f32 to vector<32x128xf32>
    %272 = arith.addf %250, %271 : vector<32x128xf32>
    %cst_130 = arith.constant 0.000000e+00 : f32
    %273 = vector.broadcast %cst_130 : f32 to vector<32x128xf32>
    %274 = arith.maximumf %272, %273 : vector<32x128xf32>
    %cst_131 = arith.constant 9.99999974E-6 : f32
    %275 = vector.broadcast %cst_131 : f32 to vector<32x128xf32>
    %276 = arith.addf %274, %275 : vector<32x128xf32>
    %c2_132 = arith.constant 2 : index
    %277 = memref.load %arg6[%c2_132] : memref<6xf32, #tpu.memory_space<smem>>
    %278 = vector.broadcast %277 : f32 to vector<32x128xf32>
    %279 = arith.addf %254, %278 : vector<32x128xf32>
    %cst_133 = arith.constant 0.000000e+00 : f32
    %280 = vector.broadcast %cst_133 : f32 to vector<32x128xf32>
    %281 = arith.maximumf %279, %280 : vector<32x128xf32>
    %c3_134 = arith.constant 3 : index
    %282 = memref.load %arg6[%c3_134] : memref<6xf32, #tpu.memory_space<smem>>
    %283 = vector.broadcast %282 : f32 to vector<32x128xf32>
    %284 = arith.addf %258, %283 : vector<32x128xf32>
    %cst_135 = arith.constant 0.000000e+00 : f32
    %285 = vector.broadcast %cst_135 : f32 to vector<32x128xf32>
    %286 = arith.maximumf %284, %285 : vector<32x128xf32>
    %c4_136 = arith.constant 4 : index
    %287 = memref.load %arg6[%c4_136] : memref<6xf32, #tpu.memory_space<smem>>
    %288 = vector.broadcast %287 : f32 to vector<32x128xf32>
    %289 = arith.addf %262, %288 : vector<32x128xf32>
    %cst_137 = arith.constant 0.000000e+00 : f32
    %290 = vector.broadcast %cst_137 : f32 to vector<32x128xf32>
    %291 = arith.maximumf %289, %290 : vector<32x128xf32>
    %c5_138 = arith.constant 5 : index
    %292 = memref.load %arg6[%c5_138] : memref<6xf32, #tpu.memory_space<smem>>
    %293 = vector.broadcast %292 : f32 to vector<32x128xf32>
    %294 = arith.addf %266, %293 : vector<32x128xf32>
    %cst_139 = arith.constant 0.000000e+00 : f32
    %295 = vector.broadcast %cst_139 : f32 to vector<32x128xf32>
    %296 = arith.maximumf %294, %295 : vector<32x128xf32>
    %c0_140 = arith.constant 0 : index
    %c0_141 = arith.constant 0 : index
    %297 = vector.load %arg9[%c0_140, %c0_141] : memref<32x128xf32, #tpu.memory_space<vmem>>, vector<32x128xf32>
    tpu.vector_store %arg9[%c0_140, %c0_141], %269 {strides = array<i32>} : memref<32x128xf32, #tpu.memory_space<vmem>>, vector<32x128xf32>,
    %298 = math.log %276 : vector<32x128xf32>
    %cst_142 = arith.constant 0.000000e+00 : f32
    %299 = vector.broadcast %cst_142 : f32 to vector<32x128xf32>
    %300 = arith.subf %299, %298 : vector<32x128xf32>
    %c0_143 = arith.constant 0 : index
    %c0_144 = arith.constant 0 : index
    %301 = vector.load %arg10[%c0_143, %c0_144] : memref<32x128xf32, #tpu.memory_space<vmem>>, vector<32x128xf32>
    tpu.vector_store %arg10[%c0_143, %c0_144], %300 {strides = array<i32>} : memref<32x128xf32, #tpu.memory_space<vmem>>, vector<32x128xf32>,
    %c0_145 = arith.constant 0 : index
    %c0_146 = arith.constant 0 : index
    %c0_147 = arith.constant 0 : index
    %302 = vector.load %arg11[%c0_145, %c0_146, %c0_147] : memref<4x32x128xf32, #tpu.memory_space<vmem>>, vector<1x32x128xf32>
    %303 = vector.shape_cast %302 : vector<1x32x128xf32> to vector<32x128xf32>
    %304 = vector.shape_cast %281 : vector<32x128xf32> to vector<1x32x128xf32>
    tpu.vector_store %arg11[%c0_145, %c0_146, %c0_147], %304 {strides = array<i32>} : memref<4x32x128xf32, #tpu.memory_space<vmem>>, vector<1x32x128xf32>,
    %c1_148 = arith.constant 1 : index
    %c0_149 = arith.constant 0 : index
    %c0_150 = arith.constant 0 : index
    %305 = vector.load %arg11[%c1_148, %c0_149, %c0_150] : memref<4x32x128xf32, #tpu.memory_space<vmem>>, vector<1x32x128xf32>
    %306 = vector.shape_cast %305 : vector<1x32x128xf32> to vector<32x128xf32>
    %307 = vector.shape_cast %286 : vector<32x128xf32> to vector<1x32x128xf32>
    tpu.vector_store %arg11[%c1_148, %c0_149, %c0_150], %307 {strides = array<i32>} : memref<4x32x128xf32, #tpu.memory_space<vmem>>, vector<1x32x128xf32>,
    %c2_151 = arith.constant 2 : index
    %c0_152 = arith.constant 0 : index
    %c0_153 = arith.constant 0 : index
    %308 = vector.load %arg11[%c2_151, %c0_152, %c0_153] : memref<4x32x128xf32, #tpu.memory_space<vmem>>, vector<1x32x128xf32>
    %309 = vector.shape_cast %308 : vector<1x32x128xf32> to vector<32x128xf32>
    %310 = vector.shape_cast %291 : vector<32x128xf32> to vector<1x32x128xf32>
    tpu.vector_store %arg11[%c2_151, %c0_152, %c0_153], %310 {strides = array<i32>} : memref<4x32x128xf32, #tpu.memory_space<vmem>>, vector<1x32x128xf32>,
    %c3_154 = arith.constant 3 : index
    %c0_155 = arith.constant 0 : index
    %c0_156 = arith.constant 0 : index
    %311 = vector.load %arg11[%c3_154, %c0_155, %c0_156] : memref<4x32x128xf32, #tpu.memory_space<vmem>>, vector<1x32x128xf32>
    %312 = vector.shape_cast %311 : vector<1x32x128xf32> to vector<32x128xf32>
    %313 = vector.shape_cast %296 : vector<32x128xf32> to vector<1x32x128xf32>
    tpu.vector_store %arg11[%c3_154, %c0_155, %c0_156], %313 {strides = array<i32>} : memref<4x32x128xf32, #tpu.memory_space<vmem>>, vector<1x32x128xf32>,
    %c0_157 = arith.constant 0 : index
    %c0_158 = arith.constant 0 : index
    %c0_159 = arith.constant 0 : index
    %314 = vector.load %arg2[%c0_157, %c0_158, %c0_159] : memref<6x32x128xf32, #tpu.memory_space<vmem>>, vector<1x32x128xf32>
    %315 = vector.shape_cast %314 : vector<1x32x128xf32> to vector<32x128xf32>
    %316 = math.rsqrt %276 : vector<32x128xf32>
    %317 = arith.mulf %315, %316 : vector<32x128xf32>
    %318 = arith.addf %269, %317 : vector<32x128xf32>
    %319 = arith.addf %281, %286 : vector<32x128xf32>
    %320 = arith.addf %319, %291 : vector<32x128xf32>
    %321 = arith.addf %320, %296 : vector<32x128xf32>
    %322 = arith.addf %321, %276 : vector<32x128xf32>
    %323 = math.rsqrt %322 : vector<32x128xf32>
    %324 = arith.mulf %323, %323 : vector<32x128xf32>
    %325 = arith.mulf %276, %269 : vector<32x128xf32>
    %326 = arith.mulf %281, %32 : vector<32x128xf32>
    %327 = arith.mulf %286, %24 : vector<32x128xf32>
    %328 = arith.mulf %291, %8 : vector<32x128xf32>
    %329 = arith.mulf %296, %16 : vector<32x128xf32>
    %cst_160 = arith.constant 0.000000e+00 : f32
    %330 = vector.broadcast %cst_160 : f32 to vector<8x128xf32>
    %331 = tpu.concatenate %330, %318, %330 in 0 : vector<8x128xf32>, vector<32x128xf32>, vector<8x128xf32> -> vector<48x128xf32>
    %332 = vector.extract_strided_slice %331 {offsets = [13, 0], sizes = [32, 128], strides = [1, 1]} : vector<48x128xf32> to vector<32x128xf32>
    %333 = arith.mulf %326, %332 : vector<32x128xf32>
    %334 = arith.addf %325, %333 : vector<32x128xf32>
    %335 = vector.extract_strided_slice %331 {offsets = [9, 0], sizes = [32, 128], strides = [1, 1]} : vector<48x128xf32> to vector<32x128xf32>
    %336 = arith.mulf %327, %335 : vector<32x128xf32>
    %337 = arith.addf %334, %336 : vector<32x128xf32>
    %338 = vector.extract_strided_slice %331 {offsets = [3, 0], sizes = [32, 128], strides = [1, 1]} : vector<48x128xf32> to vector<32x128xf32>
    %339 = arith.mulf %328, %338 : vector<32x128xf32>
    %340 = arith.addf %337, %339 : vector<32x128xf32>
    %341 = vector.extract_strided_slice %331 {offsets = [7, 0], sizes = [32, 128], strides = [1, 1]} : vector<48x128xf32> to vector<32x128xf32>
    %342 = arith.mulf %329, %341 : vector<32x128xf32>
    %343 = arith.addf %340, %342 : vector<32x128xf32>
    %344 = arith.mulf %343, %324 : vector<32x128xf32>
    %c1_161 = arith.constant 1 : index
    %c0_162 = arith.constant 0 : index
    %c0_163 = arith.constant 0 : index
    %345 = vector.load %arg2[%c1_161, %c0_162, %c0_163] : memref<6x32x128xf32, #tpu.memory_space<vmem>>, vector<1x32x128xf32>
    %346 = vector.shape_cast %345 : vector<1x32x128xf32> to vector<32x128xf32>
    %347 = arith.mulf %346, %323 : vector<32x128xf32>
    %348 = arith.addf %344, %347 : vector<32x128xf32>
    %cst_164 = arith.constant 0.000000e+00 : f32
    %349 = vector.broadcast %cst_164 : f32 to vector<8x128xf32>
    %350 = tpu.concatenate %349, %348, %349 in 0 : vector<8x128xf32>, vector<32x128xf32>, vector<8x128xf32> -> vector<48x128xf32>
    %351 = vector.extract_strided_slice %350 {offsets = [13, 0], sizes = [32, 128], strides = [1, 1]} : vector<48x128xf32> to vector<32x128xf32>
    %352 = arith.mulf %326, %351 : vector<32x128xf32>
    %353 = arith.addf %325, %352 : vector<32x128xf32>
    %354 = vector.extract_strided_slice %350 {offsets = [9, 0], sizes = [32, 128], strides = [1, 1]} : vector<48x128xf32> to vector<32x128xf32>
    %355 = arith.mulf %327, %354 : vector<32x128xf32>
    %356 = arith.addf %353, %355 : vector<32x128xf32>
    %357 = vector.extract_strided_slice %350 {offsets = [3, 0], sizes = [32, 128], strides = [1, 1]} : vector<48x128xf32> to vector<32x128xf32>
    %358 = arith.mulf %328, %357 : vector<32x128xf32>
    %359 = arith.addf %356, %358 : vector<32x128xf32>
    %360 = vector.extract_strided_slice %350 {offsets = [7, 0], sizes = [32, 128], strides = [1, 1]} : vector<48x128xf32> to vector<32x128xf32>
    %361 = arith.mulf %329, %360 : vector<32x128xf32>
    %362 = arith.addf %359, %361 : vector<32x128xf32>
    %363 = arith.mulf %362, %324 : vector<32x128xf32>
    %c2_165 = arith.constant 2 : index
    %c0_166 = arith.constant 0 : index
    %c0_167 = arith.constant 0 : index
    %364 = vector.load %arg2[%c2_165, %c0_166, %c0_167] : memref<6x32x128xf32, #tpu.memory_space<vmem>>, vector<1x32x128xf32>
    %365 = vector.shape_cast %364 : vector<1x32x128xf32> to vector<32x128xf32>
    %366 = arith.mulf %365, %323 : vector<32x128xf32>
    %367 = arith.addf %363, %366 : vector<32x128xf32>
    %cst_168 = arith.constant 0.000000e+00 : f32
    %368 = vector.broadcast %cst_168 : f32 to vector<8x128xf32>
    %369 = tpu.concatenate %368, %367, %368 in 0 : vector<8x128xf32>, vector<32x128xf32>, vector<8x128xf32> -> vector<48x128xf32>
    %370 = vector.extract_strided_slice %369 {offsets = [13, 0], sizes = [32, 128], strides = [1, 1]} : vector<48x128xf32> to vector<32x128xf32>
    %371 = arith.mulf %326, %370 : vector<32x128xf32>
    %372 = arith.addf %325, %371 : vector<32x128xf32>
    %373 = vector.extract_strided_slice %369 {offsets = [9, 0], sizes = [32, 128], strides = [1, 1]} : vector<48x128xf32> to vector<32x128xf32>
    %374 = arith.mulf %327, %373 : vector<32x128xf32>
    %375 = arith.addf %372, %374 : vector<32x128xf32>
    %376 = vector.extract_strided_slice %369 {offsets = [3, 0], sizes = [32, 128], strides = [1, 1]} : vector<48x128xf32> to vector<32x128xf32>
    %377 = arith.mulf %328, %376 : vector<32x128xf32>
    %378 = arith.addf %375, %377 : vector<32x128xf32>
    %379 = vector.extract_strided_slice %369 {offsets = [7, 0], sizes = [32, 128], strides = [1, 1]} : vector<48x128xf32> to vector<32x128xf32>
    %380 = arith.mulf %329, %379 : vector<32x128xf32>
    %381 = arith.addf %378, %380 : vector<32x128xf32>
    %382 = arith.mulf %381, %324 : vector<32x128xf32>
    %c3_169 = arith.constant 3 : index
    %c0_170 = arith.constant 0 : index
    %c0_171 = arith.constant 0 : index
    %383 = vector.load %arg2[%c3_169, %c0_170, %c0_171] : memref<6x32x128xf32, #tpu.memory_space<vmem>>, vector<1x32x128xf32>
    %384 = vector.shape_cast %383 : vector<1x32x128xf32> to vector<32x128xf32>
    %385 = arith.mulf %384, %323 : vector<32x128xf32>
    %386 = arith.addf %382, %385 : vector<32x128xf32>
    %cst_172 = arith.constant 0.000000e+00 : f32
    %387 = vector.broadcast %cst_172 : f32 to vector<8x128xf32>
    %388 = tpu.concatenate %387, %386, %387 in 0 : vector<8x128xf32>, vector<32x128xf32>, vector<8x128xf32> -> vector<48x128xf32>
    %389 = vector.extract_strided_slice %388 {offsets = [13, 0], sizes = [32, 128], strides = [1, 1]} : vector<48x128xf32> to vector<32x128xf32>
    %390 = arith.mulf %326, %389 : vector<32x128xf32>
    %391 = arith.addf %325, %390 : vector<32x128xf32>
    %392 = vector.extract_strided_slice %388 {offsets = [9, 0], sizes = [32, 128], strides = [1, 1]} : vector<48x128xf32> to vector<32x128xf32>
    %393 = arith.mulf %327, %392 : vector<32x128xf32>
    %394 = arith.addf %391, %393 : vector<32x128xf32>
    %395 = vector.extract_strided_slice %388 {offsets = [3, 0], sizes = [32, 128], strides = [1, 1]} : vector<48x128xf32> to vector<32x128xf32>
    %396 = arith.mulf %328, %395 : vector<32x128xf32>
    %397 = arith.addf %394, %396 : vector<32x128xf32>
    %398 = vector.extract_strided_slice %388 {offsets = [7, 0], sizes = [32, 128], strides = [1, 1]} : vector<48x128xf32> to vector<32x128xf32>
    %399 = arith.mulf %329, %398 : vector<32x128xf32>
    %400 = arith.addf %397, %399 : vector<32x128xf32>
    %401 = arith.mulf %400, %324 : vector<32x128xf32>
    %c4_173 = arith.constant 4 : index
    %c0_174 = arith.constant 0 : index
    %c0_175 = arith.constant 0 : index
    %402 = vector.load %arg2[%c4_173, %c0_174, %c0_175] : memref<6x32x128xf32, #tpu.memory_space<vmem>>, vector<1x32x128xf32>
    %403 = vector.shape_cast %402 : vector<1x32x128xf32> to vector<32x128xf32>
    %404 = arith.mulf %403, %323 : vector<32x128xf32>
    %405 = arith.addf %401, %404 : vector<32x128xf32>
    %cst_176 = arith.constant 0.000000e+00 : f32
    %406 = vector.broadcast %cst_176 : f32 to vector<8x128xf32>
    %407 = tpu.concatenate %406, %405, %406 in 0 : vector<8x128xf32>, vector<32x128xf32>, vector<8x128xf32> -> vector<48x128xf32>
    %408 = vector.extract_strided_slice %407 {offsets = [13, 0], sizes = [32, 128], strides = [1, 1]} : vector<48x128xf32> to vector<32x128xf32>
    %409 = arith.mulf %326, %408 : vector<32x128xf32>
    %410 = arith.addf %325, %409 : vector<32x128xf32>
    %411 = vector.extract_strided_slice %407 {offsets = [9, 0], sizes = [32, 128], strides = [1, 1]} : vector<48x128xf32> to vector<32x128xf32>
    %412 = arith.mulf %327, %411 : vector<32x128xf32>
    %413 = arith.addf %410, %412 : vector<32x128xf32>
    %414 = vector.extract_strided_slice %407 {offsets = [3, 0], sizes = [32, 128], strides = [1, 1]} : vector<48x128xf32> to vector<32x128xf32>
    %415 = arith.mulf %328, %414 : vector<32x128xf32>
    %416 = arith.addf %413, %415 : vector<32x128xf32>
    %417 = vector.extract_strided_slice %407 {offsets = [7, 0], sizes = [32, 128], strides = [1, 1]} : vector<48x128xf32> to vector<32x128xf32>
    %418 = arith.mulf %329, %417 : vector<32x128xf32>
    %419 = arith.addf %416, %418 : vector<32x128xf32>
    %420 = arith.mulf %419, %324 : vector<32x128xf32>
    %c5_177 = arith.constant 5 : index
    %c0_178 = arith.constant 0 : index
    %c0_179 = arith.constant 0 : index
    %421 = vector.load %arg2[%c5_177, %c0_178, %c0_179] : memref<6x32x128xf32, #tpu.memory_space<vmem>>, vector<1x32x128xf32>
    %422 = vector.shape_cast %421 : vector<1x32x128xf32> to vector<32x128xf32>
    %423 = arith.mulf %422, %323 : vector<32x128xf32>
    %424 = arith.addf %420, %423 : vector<32x128xf32>
    %cst_180 = arith.constant 0.000000e+00 : f32
    %425 = vector.broadcast %cst_180 : f32 to vector<8x128xf32>
    %426 = tpu.concatenate %425, %424, %425 in 0 : vector<8x128xf32>, vector<32x128xf32>, vector<8x128xf32> -> vector<48x128xf32>
    %c0_181 = arith.constant 0 : index
    %c0_182 = arith.constant 0 : index
    %427 = vector.load %arg4[%c0_181, %c0_182] : memref<32x1xf32, #tpu.memory_space<vmem>>, vector<32x1xf32>
    %c0_183 = arith.constant 0 : index
    %428 = memref.load %arg7[%c0_183] : memref<9xf32, #tpu.memory_space<smem>>
    %429 = vector.extract_strided_slice %426 {offsets = [2, 0], sizes = [32, 128], strides = [1, 1]} : vector<48x128xf32> to vector<32x128xf32>
    %430 = arith.mulf %4, %429 : vector<32x128xf32>
    %431 = vector.broadcast %428 : f32 to vector<32x128xf32>
    %432 = arith.mulf %431, %430 : vector<32x128xf32>
    %433 = vector.broadcast %427 : vector<32x1xf32> to vector<32x128xf32>
    %434 = arith.addf %433, %432 : vector<32x128xf32>
    %c1_184 = arith.constant 1 : index
    %435 = memref.load %arg7[%c1_184] : memref<9xf32, #tpu.memory_space<smem>>
    %436 = vector.extract_strided_slice %426 {offsets = [3, 0], sizes = [32, 128], strides = [1, 1]} : vector<48x128xf32> to vector<32x128xf32>
    %437 = arith.mulf %8, %436 : vector<32x128xf32>
    %438 = vector.broadcast %435 : f32 to vector<32x128xf32>
    %439 = arith.mulf %438, %437 : vector<32x128xf32>
    %440 = arith.addf %434, %439 : vector<32x128xf32>
    %c2_185 = arith.constant 2 : index
    %441 = memref.load %arg7[%c2_185] : memref<9xf32, #tpu.memory_space<smem>>
    %442 = vector.extract_strided_slice %426 {offsets = [4, 0], sizes = [32, 128], strides = [1, 1]} : vector<48x128xf32> to vector<32x128xf32>
    %443 = arith.mulf %12, %442 : vector<32x128xf32>
    %444 = vector.broadcast %441 : f32 to vector<32x128xf32>
    %445 = arith.mulf %444, %443 : vector<32x128xf32>
    %446 = arith.addf %440, %445 : vector<32x128xf32>
    %c3_186 = arith.constant 3 : index
    %447 = memref.load %arg7[%c3_186] : memref<9xf32, #tpu.memory_space<smem>>
    %448 = vector.extract_strided_slice %426 {offsets = [7, 0], sizes = [32, 128], strides = [1, 1]} : vector<48x128xf32> to vector<32x128xf32>
    %449 = arith.mulf %16, %448 : vector<32x128xf32>
    %450 = vector.broadcast %447 : f32 to vector<32x128xf32>
    %451 = arith.mulf %450, %449 : vector<32x128xf32>
    %452 = arith.addf %446, %451 : vector<32x128xf32>
    %c4_187 = arith.constant 4 : index
    %453 = memref.load %arg7[%c4_187] : memref<9xf32, #tpu.memory_space<smem>>
    %454 = vector.extract_strided_slice %426 {offsets = [8, 0], sizes = [32, 128], strides = [1, 1]} : vector<48x128xf32> to vector<32x128xf32>
    %455 = arith.mulf %20, %454 : vector<32x128xf32>
    %456 = vector.broadcast %453 : f32 to vector<32x128xf32>
    %457 = arith.mulf %456, %455 : vector<32x128xf32>
    %458 = arith.addf %452, %457 : vector<32x128xf32>
    %c5_188 = arith.constant 5 : index
    %459 = memref.load %arg7[%c5_188] : memref<9xf32, #tpu.memory_space<smem>>
    %460 = vector.extract_strided_slice %426 {offsets = [9, 0], sizes = [32, 128], strides = [1, 1]} : vector<48x128xf32> to vector<32x128xf32>
    %461 = arith.mulf %24, %460 : vector<32x128xf32>
    %462 = vector.broadcast %459 : f32 to vector<32x128xf32>
    %463 = arith.mulf %462, %461 : vector<32x128xf32>
    %464 = arith.addf %458, %463 : vector<32x128xf32>
    %c6_189 = arith.constant 6 : index
    %465 = memref.load %arg7[%c6_189] : memref<9xf32, #tpu.memory_space<smem>>
    %466 = vector.extract_strided_slice %426 {offsets = [12, 0], sizes = [32, 128], strides = [1, 1]} : vector<48x128xf32> to vector<32x128xf32>
    %467 = arith.mulf %28, %466 : vector<32x128xf32>
    %468 = vector.broadcast %465 : f32 to vector<32x128xf32>
    %469 = arith.mulf %468, %467 : vector<32x128xf32>
    %470 = arith.addf %464, %469 : vector<32x128xf32>
    %c7_190 = arith.constant 7 : index
    %471 = memref.load %arg7[%c7_190] : memref<9xf32, #tpu.memory_space<smem>>
    %472 = vector.extract_strided_slice %426 {offsets = [13, 0], sizes = [32, 128], strides = [1, 1]} : vector<48x128xf32> to vector<32x128xf32>
    %473 = arith.mulf %32, %472 : vector<32x128xf32>
    %474 = vector.broadcast %471 : f32 to vector<32x128xf32>
    %475 = arith.mulf %474, %473 : vector<32x128xf32>
    %476 = arith.addf %470, %475 : vector<32x128xf32>
    %c8_191 = arith.constant 8 : index
    %477 = memref.load %arg7[%c8_191] : memref<9xf32, #tpu.memory_space<smem>>
    %478 = vector.extract_strided_slice %426 {offsets = [14, 0], sizes = [32, 128], strides = [1, 1]} : vector<48x128xf32> to vector<32x128xf32>
    %479 = arith.mulf %36, %478 : vector<32x128xf32>
    %480 = vector.broadcast %477 : f32 to vector<32x128xf32>
    %481 = arith.mulf %480, %479 : vector<32x128xf32>
    %482 = arith.addf %476, %481 : vector<32x128xf32>
    %c0_192 = arith.constant 0 : index
    %c0_193 = arith.constant 0 : index
    %483 = vector.load %arg8[%c0_192, %c0_193] : memref<32x128xf32, #tpu.memory_space<vmem>>, vector<32x128xf32>
    tpu.vector_store %arg8[%c0_192, %c0_193], %482 {strides = array<i32>} : memref<32x128xf32, #tpu.memory_space<vmem>>, vector<32x128xf32>,
    return
  }
  func.func @transform_0(%arg0: i32) -> (i32, i32) {
    %c0_i32 = arith.constant 0 : i32
    %c0_i32_0 = arith.constant 0 : i32
    return %c0_i32, %arg0 : i32, i32
  }
  func.func @transform_1(%arg0: i32) -> (i32, i32, i32) {
    %c0_i32 = arith.constant 0 : i32
    %c0_i32_0 = arith.constant 0 : i32
    %c0_i32_1 = arith.constant 0 : i32
    return %c0_i32, %c0_i32_0, %arg0 : i32, i32, i32
  }
  func.func @transform_2(%arg0: i32) -> (i32, i32, i32) {
    %c0_i32 = arith.constant 0 : i32
    %c0_i32_0 = arith.constant 0 : i32
    %c0_i32_1 = arith.constant 0 : i32
    %c0_i32_2 = arith.constant 0 : i32
    return %c0_i32, %c0_i32_0, %c0_i32_1 : i32, i32, i32
  }
  func.func @transform_3(%arg0: i32) -> (i32, i32) {
    %c0_i32 = arith.constant 0 : i32
    %c0_i32_0 = arith.constant 0 : i32
    %c0_i32_1 = arith.constant 0 : i32
    return %c0_i32, %c0_i32_0 : i32, i32
  }
  func.func @transform_4(%arg0: i32) -> (i32, i32) {
    %c0_i32 = arith.constant 0 : i32
    %c0_i32_0 = arith.constant 0 : i32
    %c0_i32_1 = arith.constant 0 : i32
    return %c0_i32, %c0_i32_0 : i32, i32
  }
  func.func @transform_5(%arg0: i32) -> i32 {
    %c0_i32 = arith.constant 0 : i32
    %c0_i32_0 = arith.constant 0 : i32
    return %c0_i32 : i32
  }
  func.func @transform_6(%arg0: i32) -> i32 {
    %c0_i32 = arith.constant 0 : i32
    %c0_i32_0 = arith.constant 0 : i32
    return %c0_i32 : i32
  }
  func.func @transform_7(%arg0: i32) -> (i32, i32) {
    %c0_i32 = arith.constant 0 : i32
    %c0_i32_0 = arith.constant 0 : i32
    return %c0_i32, %arg0 : i32, i32
  }
  func.func @transform_8(%arg0: i32) -> (i32, i32) {
    %c0_i32 = arith.constant 0 : i32
    %c0_i32_0 = arith.constant 0 : i32
    return %c0_i32, %arg0 : i32, i32
  }
  func.func @transform_9(%arg0: i32) -> (i32, i32) {
    %c0_i32 = arith.constant 0 : i32
    %c0_i32_0 = arith.constant 0 : i32
    return %c0_i32, %arg0 : i32, i32
  }
  func.func @transform_10(%arg0: i32) -> (i32, i32, i32) {
    %c0_i32 = arith.constant 0 : i32
    %c0_i32_0 = arith.constant 0 : i32
    %c0_i32_1 = arith.constant 0 : i32
    return %c0_i32, %c0_i32_0, %arg0 : i32, i32, i32
  }
}

</mosaic_0001>

<llo_original>
// kernel: tpu_custom_call.1
$region0: #{tpu_custom_call.1}
  #allocation0 [shape = 'u32[]', space=smem, size = 0x4, offset = 0x4, fixed_abs, tag = 'smem constant byte address 0x4 - core index']
  #allocation1 [shape = 'u32[144,128]{1,0:T(1,128)}', space=vmem, size = 0x12000, scoped, tag = 'internal scratch']
  %s0 = inlined_call_operand.hbm [shape: f32[32,128], index: 0, kind: input, shape index: {}]
  %s1 = inlined_call_operand.hbm [shape: f32[32,128], index: 1, kind: output, shape index: {}]
  %s2 = sld [smem:[#allocation0]]
  $region18: #{tpu_custom_call.1} parent=0
    _
  %s4 = ssub.s32 1, %s2
  %s5 = scalar_select 0, %s4, %s2
  $region1: #{tpu_custom_call.1} parent=0
    #allocation2 [shape = 'u8[16384]{0}', space=vmem, size = 0x4000, scoped, tag = 'input window, operand 0, single buffered']
    #allocation3 [shape = 's32[1]{0}', space=sflag, size = 0x4, scoped, tag = 'scoped memory for tpu_custom_call.1']
    #allocation4 [shape = 's32[1]{0}', space=sflag, size = 0x4, scoped, tag = 'scoped memory for tpu_custom_call.1']
    #allocation5 [shape = 'u8[16384]{0}', space=vmem, size = 0x4000, scoped, tag = 'output window, operand 0, single buffered']
    %6 = vsyncpa [#allocation3], 0
    %7 = vsyncpa [#allocation4], 0
    // Predicated region
    $region2: #{tpu_custom_call.1} parent=1 // pred_check
      _
    $region3: #{tpu_custom_call.1} parent=1 // pred_check_branch
      %9 = sbr.rel (0) target = $region5
    $region4: #{tpu_custom_call.1} parent=1 // pred_region
      %s11 = ssub.s32 512, 512
      %12 = vsyncadd [#allocation3], %s11
      %s13 = sshll.u32 [#allocation2], 4
      %s14 = int_to_ptr.vmem [resolvable:$true] %s13
      %19 = dma.hbm_to_vmem [thread:$0]  %s0, 512, %s14, [#allocation3], 128, 128, 8
    $region5: #{tpu_custom_call.1} parent=1 // pred_fallthru
      _
    // Predicated region
    $region6: #{tpu_custom_call.1} parent=1 // pred_check
      _
    $region7: #{tpu_custom_call.1} parent=1 // pred_check_branch
      %21 = sbr.rel (0) target = $region9
    $region8: #{tpu_custom_call.1} parent=1 // pred_region
      %22 = dma.done [#allocation3], 512
    $region9: #{tpu_custom_call.1} parent=1 // pred_fallthru
      _
    %v23 = vld [vmem:[#allocation2] sm:$0xff]
    %v24 = vld [vmem:[#allocation2 + $0x8] sm:$0xff]
    %v25 = vld [vmem:[#allocation2 + $0x10] sm:$0xff]
    %v26 = vld [vmem:[#allocation2 + $0x18] sm:$0xff]
    %v27 = vrot.slane %v23, 7
    %v28 = vrot.slane %v24, 7
    %v29 = vrot.slane %v25, 7
    %v30 = vrot.slane %v26, 7
    %v31 = vlaneseq
    %v32 = vshrl.u32 %v31, 7
    %vm33 = vcmp.lt.s32.totalorder %v32, 1
    %v34 = vsel %vm33, %v29, %v30
    %v35 = vsel %vm33, %v28, %v29
    %v36 = vsel %vm33, %v27, %v28
    %v37 = vsel %vm33, %v30, %v27
    %38 = vst [vmem:[#allocation5] sm:$0xff] %v37
    %39 = vst [vmem:[#allocation5 + $0x8] sm:$0xff] %v36
    %40 = vst [vmem:[#allocation5 + $0x10] sm:$0xff] %v35
    %41 = vst [vmem:[#allocation5 + $0x18] sm:$0xff] %v34
    // Predicated region
    $region10: #{tpu_custom_call.1} parent=1 // pred_check
      _
    $region11: #{tpu_custom_call.1} parent=1 // pred_check_branch
      %43 = sbr.rel (0) target = $region13
    $region12: #{tpu_custom_call.1} parent=1 // pred_region
      %s45 = ssub.s32 512, 512
      %46 = vsyncadd [#allocation4], %s45
      %s47 = sshll.u32 [#allocation5], 4
      %s48 = int_to_ptr.vmem [resolvable:$true] %s47
      %53 = dma.vmem_to_hbm [thread:$0]  %s48, 512, %s1, [#allocation4], 128, 128, 8
    $region13: #{tpu_custom_call.1} parent=1 // pred_fallthru
      _
    // Predicated region
    $region14: #{tpu_custom_call.1} parent=1 // pred_check
      _
    $region15: #{tpu_custom_call.1} parent=1 // pred_check_branch
      %55 = sbr.rel (0) target = $region17
    $region16: #{tpu_custom_call.1} parent=1 // pred_region
      %56 = dma.done [#allocation4], 512
    $region17: #{tpu_custom_call.1} parent=1 // pred_fallthru
      _
    %57 = vsyncpa [#allocation3], 1
    %58 = vsyncpa [#allocation4], 1

// kernel: mul.45
$region0: #{mul.45}
  %s0 = inlined_call_operand.vmem [shape: f32[10,3,3], index: 0, kind: input, shape index: {}]
  %s1 = inlined_call_operand.vmem [shape: f32[10,9], index: 1, kind: output, shape index: {}]
  $region1: #{mul.45} parent=0
    #allocation0 [shape = 'u8[12288]{0}', space=vmem, size = 0x3000, scoped, tag = 'scoped mem for input reshape']
    %s3 = sshllo.u32 0, 4
    %s4 = smul.addr 4, 2
    %s5 = scalar_lea.vmem %s0, %s4
    %v6 = vld [vmem:[%s5] sm:%s3]
    %s7 = scalar_lea.vmem [#allocation0], 16
    %8 = vst [vmem:[%s7] sm:%s3] %v6
    %s9 = scalar_lea.vmem %s0, 4
    %v10 = vld [vmem:[%s9] sm:%s3]
    %s11 = scalar_lea.vmem [#allocation0], 8
    %12 = vst [vmem:[%s11] sm:%s3] %v10
    %v13 = vld [vmem:[%s0] sm:%s3]
    %14 = vst [vmem:[#allocation0] sm:%s3] %v13
    %v15 = vld [vmem:[#allocation0] sm:$0x7]
    %vm16 = vcmask 80896
    %17 = vst.msk [vmem:[%s1] sm:$0x7] %vm16, %v15
    %s18 = scalar_lea.vmem [#allocation0], 8
    %v19 = vld [vmem:[%s18] sm:$0x7]
    %vm20 = vcmask 80896
    %s21 = scalar_lea.vmem %s1, 3
    %22 = vst.msk [vmem:[%s21] sm:$0x7] %vm20, %v19
    %s23 = scalar_lea.vmem [#allocation0], 16
    %v24 = vld [vmem:[%s23] sm:$0x7]
    %vm25 = vcmask 80896
    %s26 = scalar_lea.vmem %s1, 6
    %27 = vst.msk [vmem:[%s26] sm:$0x7] %vm25, %v24

// kernel: mul.63
$region0: #{mul.63}
  %s0 = inlined_call_operand.vmem [shape: f32[3,3], index: 0, kind: input, shape index: {}]
  %s1 = inlined_call_operand.vmem [shape: f32[9], index: 1, kind: output, shape index: {}]
  $region1: #{mul.63} parent=0
    #allocation0 [shape = 'u8[4096]{0}', space=vmem, size = 0x1000, scoped, tag = 'scoped mem for output reshape']
    #allocation1 [shape = 'u8[4096]{0}', space=vmem, size = 0x1000, scoped, tag = 'scoped mem for input reshape']
    %s3 = sshllo.u32 0, 4
    %v4 = vld [vmem:[%s0] sm:%s3]
    %5 = vst [vmem:[#allocation1] sm:%s3] %v4
    %v6 = vld [vmem:[#allocation1] sm:$0x1]
    %vm7 = vcmask 23552
    %8 = vst.msk [vmem:[#allocation0] sm:$0x1] %vm7, %v6
    %s9 = scalar_lea.vmem [#allocation1], 2
    %v10 = vld [vmem:[%s9] sm:$0x1]
    %11 = vrot.lane.b32.xlu0 %v10, 6
    %v12 = vpop.permute.xlu0 %11
    %vm13 = vcmask 72752
    %14 = vst.msk [vmem:[#allocation0] sm:$0x1] %vm13, %v12
    %s15 = scalar_lea.vmem [#allocation1], 1
    %v16 = vld [vmem:[%s15] sm:$0x1]
    %17 = vrot.lane.b32.xlu0 %v16, 3
    %v18 = vpop.permute.xlu0 %17
    %vm19 = vcmask 48152
    %20 = vst.msk [vmem:[#allocation0] sm:$0x1] %vm19, %v18
    %s22 = sshllo.u32 0, 1
    %v24 = vld [vmem:[#allocation0] sm:%s22]
    %s25 = sshllo.u32 0, 1
    %26 = vst [vmem:[%s1] sm:%s25] %v24

// kernel: _forward_impl.1
$region0: #{_forward_impl.1}
  #allocation0 [shape = 'u32[]', space=smem, size = 0x4, offset = 0x4, fixed_abs, tag = 'smem constant byte address 0x4 - core index']
  #allocation1 [shape = 'u32[144,128]{1,0:T(1,128)}', space=vmem, size = 0x12000, scoped, tag = 'internal scratch']
  %s0 = inlined_call_operand.vmem [shape: f32[32,128], index: 0, kind: input, shape index: {}]
  %s1 = inlined_call_operand.vmem [shape: f32[6,32,128], index: 1, kind: input, shape index: {}]
  %s2 = inlined_call_operand.vmem [shape: f32[9,32,1], index: 2, kind: input, shape index: {}]
  %s3 = inlined_call_operand.vmem [shape: f32[32,1], index: 3, kind: input, shape index: {}]
  %s4 = inlined_call_operand.vmem [shape: f32[6,9], index: 4, kind: input, shape index: {}]
  %s5 = inlined_call_operand.vmem [shape: f32[6], index: 5, kind: input, shape index: {}]
  %s6 = inlined_call_operand.vmem [shape: f32[9], index: 6, kind: input, shape index: {}]
  %s7 = inlined_call_operand.vmem [shape: f32[32,128], index: 7, kind: output, shape index: {0}]
  %s8 = inlined_call_operand.vmem [shape: f32[32,128], index: 8, kind: output, shape index: {1}]
  %s9 = inlined_call_operand.vmem [shape: f32[32,128], index: 9, kind: output, shape index: {2}]
  %s10 = inlined_call_operand.vmem [shape: f32[4,32,128], index: 10, kind: output, shape index: {3}]
  %11 = xla_tuple %s7, %s8, %s9, %s10
  %s12 = sld [smem:[#allocation0]]
  $region74: #{_forward_impl.1} parent=0
    _
  %s14 = ssub.s32 1, %s12
  %s15 = scalar_select 0, %s14, %s12
  $region1: #{_forward_impl.1} parent=0
    #allocation2 [shape = 'u8[4096]{0}', space=smem, size = 0x1000, scoped, tag = 'input window, operand 4, single buffered']
    #allocation3 [shape = 's32[1]{0}', space=sflag, size = 0x4, scoped, tag = 'scoped memory for _forward_impl.1']
    #allocation4 [shape = 'u8[512]{0}', space=smem, size = 0x200, scoped, tag = 'input window, operand 5, single buffered']
    #allocation5 [shape = 's32[1]{0}', space=sflag, size = 0x4, scoped, tag = 'scoped memory for _forward_impl.1']
    #allocation6 [shape = 'u8[512]{0}', space=smem, size = 0x200, scoped, tag = 'input window, operand 6, single buffered']
    %16 = vsyncpa [#allocation3], 0
    %17 = vsyncpa [#allocation5], 0
    // Predicated region
    $region2: #{_forward_impl.1} parent=1 // pred_check
      _
    $region3: #{_forward_impl.1} parent=1 // pred_check_branch
      %19 = sbr.rel (0) target = $region5
    $region4: #{_forward_impl.1} parent=1 // pred_region
      _
    $region5: #{_forward_impl.1} parent=1 // pred_fallthru
      _
    // Predicated region
    $region6: #{_forward_impl.1} parent=1 // pred_check
      _
    $region7: #{_forward_impl.1} parent=1 // pred_check_branch
      %21 = sbr.rel (0) target = $region9
    $region8: #{_forward_impl.1} parent=1 // pred_region
      _
    $region9: #{_forward_impl.1} parent=1 // pred_fallthru
      _
    // Predicated region
    $region10: #{_forward_impl.1} parent=1 // pred_check
      _
    $region11: #{_forward_impl.1} parent=1 // pred_check_branch
      %23 = sbr.rel (0) target = $region13
    $region12: #{_forward_impl.1} parent=1 // pred_region
      _
    $region13: #{_forward_impl.1} parent=1 // pred_fallthru
      _
    // Predicated region
    $region14: #{_forward_impl.1} parent=1 // pred_check
      _
    $region15: #{_forward_impl.1} parent=1 // pred_check_branch
      %25 = sbr.rel (0) target = $region17
    $region16: #{_forward_impl.1} parent=1 // pred_region
      _
    $region17: #{_forward_impl.1} parent=1 // pred_fallthru
      _
    // Predicated region
    $region18: #{_forward_impl.1} parent=1 // pred_check
      _
    $region19: #{_forward_impl.1} parent=1 // pred_check_branch
      %27 = sbr.rel (0) target = $region21
    $region20: #{_forward_impl.1} parent=1 // pred_region
      %s29 = ssub.s32 128, 128
      %30 = vsyncadd [#allocation3], %s29
      %s32 = sshll.u32 %s4, 4
      %s33 = int_to_ptr.vmem [resolvable:$true] %s32
      %35 = dma.vmem_to_smem %s33, 128, [#allocation2], [#allocation3]
    $region21: #{_forward_impl.1} parent=1 // pred_fallthru
      _
    // Predicated region
    $region22: #{_forward_impl.1} parent=1 // pred_check
      _
    $region23: #{_forward_impl.1} parent=1 // pred_check_branch
      %37 = sbr.rel (0) target = $region25
    $region24: #{_forward_impl.1} parent=1 // pred_region
      %s39 = ssub.s32 16, 16
      %40 = vsyncadd [#allocation5], %s39
      %s42 = sshll.u32 %s5, 4
      %s43 = int_to_ptr.vmem [resolvable:$true] %s42
      %45 = dma.vmem_to_smem %s43, 16, [#allocation4], [#allocation5]
    $region25: #{_forward_impl.1} parent=1 // pred_fallthru
      _
    // Predicated region
    $region26: #{_forward_impl.1} parent=1 // pred_check
      _
    $region27: #{_forward_impl.1} parent=1 // pred_check_branch
      %47 = sbr.rel (0) target = $region29
    $region28: #{_forward_impl.1} parent=1 // pred_region
      %s49 = ssub.s32 16, 16
      %50 = vsyncadd [#allocation5], %s49
      %s52 = sshll.u32 %s6, 4
      %s53 = int_to_ptr.vmem [resolvable:$true] %s52
      %55 = dma.vmem_to_smem %s53, 16, [#allocation6], [#allocation5]
    $region29: #{_forward_impl.1} parent=1 // pred_fallthru
      _
    // Predicated region
    $region30: #{_forward_impl.1} parent=1 // pred_check
      _
    $region31: #{_forward_impl.1} parent=1 // pred_check_branch
      %57 = sbr.rel (0) target = $region33
    $region32: #{_forward_impl.1} parent=1 // pred_region
      %58 = dma.done [#allocation3], 128
    $region33: #{_forward_impl.1} parent=1 // pred_fallthru
      _
    // Predicated region
    $region34: #{_forward_impl.1} parent=1 // pred_check
      _
    $region35: #{_forward_impl.1} parent=1 // pred_check_branch
      %60 = sbr.rel (0) target = $region37
    $region36: #{_forward_impl.1} parent=1 // pred_region
      %61 = dma.done [#allocation5], 16
    $region37: #{_forward_impl.1} parent=1 // pred_fallthru
      _
    // Predicated region
    $region38: #{_forward_impl.1} parent=1 // pred_check
      _
    $region39: #{_forward_impl.1} parent=1 // pred_check_branch
      %63 = sbr.rel (0) target = $region41
    $region40: #{_forward_impl.1} parent=1 // pred_region
      %64 = dma.done [#allocation5], 16
    $region41: #{_forward_impl.1} parent=1 // pred_fallthru
      _
    %65 = sfence
    %v66 = vld [vmem:[%s0] sm:$0xff]
    %v67 = vld [vmem:[%s0 + $0x8] sm:$0xff]
    %v68 = vld [vmem:[%s0 + $0x10] sm:$0xff]
    %v69 = vld [vmem:[%s0 + $0x18] sm:$0xff]
    %v70 = vld [vmem:[%s2] sm:$0xff]
    %v71 = vld [vmem:[%s2 + $0x8] sm:$0xff]
    %v72 = vld [vmem:[%s2 + $0x10] sm:$0xff]
    %v73 = vld [vmem:[%s2 + $0x18] sm:$0xff]
    %75 = vset.pattern.permute.xlu0 0
    %76 = vperm.xlu0 %75, %v70
    %v77 = vpop.permute.xlu0 %76
    %80 = vset.pattern.permute.xlu0 0
    %81 = vperm.xlu0 %80, %v71
    %v82 = vpop.permute.xlu0 %81
    %85 = vset.pattern.permute.xlu0 0
    %86 = vperm.xlu0 %85, %v72
    %v87 = vpop.permute.xlu0 %86
    %90 = vset.pattern.permute.xlu0 0
    %91 = vperm.xlu0 %90, %v73
    %v92 = vpop.permute.xlu0 %91
    %s94 = scalar_lea.vmem %s2, 32
    %v95 = vld [vmem:[%s94] sm:$0xff]
    %v96 = vld [vmem:[%s94 + $0x8] sm:$0xff]
    %v97 = vld [vmem:[%s94 + $0x10] sm:$0xff]
    %v98 = vld [vmem:[%s94 + $0x18] sm:$0xff]
    %100 = vset.pattern.permute.xlu0 0
    %101 = vperm.xlu0 %100, %v95
    %v102 = vpop.permute.xlu0 %101
    %105 = vset.pattern.permute.xlu0 0
    %106 = vperm.xlu0 %105, %v96
    %v107 = vpop.permute.xlu0 %106
    %110 = vset.pattern.permute.xlu0 0
    %111 = vperm.xlu0 %110, %v97
    %v112 = vpop.permute.xlu0 %111
    %115 = vset.pattern.permute.xlu0 0
    %116 = vperm.xlu0 %115, %v98
    %v117 = vpop.permute.xlu0 %116
    %s119 = scalar_lea.vmem %s2, 64
    %v120 = vld [vmem:[%s119] sm:$0xff]
    %v121 = vld [vmem:[%s119 + $0x8] sm:$0xff]
    %v122 = vld [vmem:[%s119 + $0x10] sm:$0xff]
    %v123 = vld [vmem:[%s119 + $0x18] sm:$0xff]
    %125 = vset.pattern.permute.xlu0 0
    %126 = vperm.xlu0 %125, %v120
    %v127 = vpop.permute.xlu0 %126
    %130 = vset.pattern.permute.xlu0 0
    %131 = vperm.xlu0 %130, %v121
    %v132 = vpop.permute.xlu0 %131
    %135 = vset.pattern.permute.xlu0 0
    %136 = vperm.xlu0 %135, %v122
    %v137 = vpop.permute.xlu0 %136
    %140 = vset.pattern.permute.xlu0 0
    %141 = vperm.xlu0 %140, %v123
    %v142 = vpop.permute.xlu0 %141
    %s144 = scalar_lea.vmem %s2, 96
    %v145 = vld [vmem:[%s144] sm:$0xff]
    %v146 = vld [vmem:[%s144 + $0x8] sm:$0xff]
    %v147 = vld [vmem:[%s144 + $0x10] sm:$0xff]
    %v148 = vld [vmem:[%s144 + $0x18] sm:$0xff]
    %150 = vset.pattern.permute.xlu0 0
    %151 = vperm.xlu0 %150, %v145
    %v152 = vpop.permute.xlu0 %151
    %155 = vset.pattern.permute.xlu0 0
    %156 = vperm.xlu0 %155, %v146
    %v157 = vpop.permute.xlu0 %156
    %160 = vset.pattern.permute.xlu0 0
    %161 = vperm.xlu0 %160, %v147
    %v162 = vpop.permute.xlu0 %161
    %165 = vset.pattern.permute.xlu0 0
    %166 = vperm.xlu0 %165, %v148
    %v167 = vpop.permute.xlu0 %166
    %s169 = scalar_lea.vmem %s2, 128
    %v170 = vld [vmem:[%s169] sm:$0xff]
    %v171 = vld [vmem:[%s169 + $0x8] sm:$0xff]
    %v172 = vld [vmem:[%s169 + $0x10] sm:$0xff]
    %v173 = vld [vmem:[%s169 + $0x18] sm:$0xff]
    %175 = vset.pattern.permute.xlu0 0
    %176 = vperm.xlu0 %175, %v170
    %v177 = vpop.permute.xlu0 %176
    %180 = vset.pattern.permute.xlu0 0
    %181 = vperm.xlu0 %180, %v171
    %v182 = vpop.permute.xlu0 %181
    %185 = vset.pattern.permute.xlu0 0
    %186 = vperm.xlu0 %185, %v172
    %v187 = vpop.permute.xlu0 %186
    %190 = vset.pattern.permute.xlu0 0
    %191 = vperm.xlu0 %190, %v173
    %v192 = vpop.permute.xlu0 %191
    %s194 = scalar_lea.vmem %s2, 160
    %v195 = vld [vmem:[%s194] sm:$0xff]
    %v196 = vld [vmem:[%s194 + $0x8] sm:$0xff]
    %v197 = vld [vmem:[%s194 + $0x10] sm:$0xff]
    %v198 = vld [vmem:[%s194 + $0x18] sm:$0xff]
    %200 = vset.pattern.permute.xlu0 0
    %201 = vperm.xlu0 %200, %v195
    %v202 = vpop.permute.xlu0 %201
    %205 = vset.pattern.permute.xlu0 0
    %206 = vperm.xlu0 %205, %v196
    %v207 = vpop.permute.xlu0 %206
    %210 = vset.pattern.permute.xlu0 0
    %211 = vperm.xlu0 %210, %v197
    %v212 = vpop.permute.xlu0 %211
    %215 = vset.pattern.permute.xlu0 0
    %216 = vperm.xlu0 %215, %v198
    %v217 = vpop.permute.xlu0 %216
    %s219 = scalar_lea.vmem %s2, 192
    %v220 = vld [vmem:[%s219] sm:$0xff]
    %v221 = vld [vmem:[%s219 + $0x8] sm:$0xff]
    %v222 = vld [vmem:[%s219 + $0x10] sm:$0xff]
    %v223 = vld [vmem:[%s219 + $0x18] sm:$0xff]
    %225 = vset.pattern.permute.xlu0 0
    %226 = vperm.xlu0 %225, %v220
    %v227 = vpop.permute.xlu0 %226
    %230 = vset.pattern.permute.xlu0 0
    %231 = vperm.xlu0 %230, %v221
    %v232 = vpop.permute.xlu0 %231
    %235 = vset.pattern.permute.xlu0 0
    %236 = vperm.xlu0 %235, %v222
    %v237 = vpop.permute.xlu0 %236
    %240 = vset.pattern.permute.xlu0 0
    %241 = vperm.xlu0 %240, %v223
    %v242 = vpop.permute.xlu0 %241
    %s244 = scalar_lea.vmem %s2, 224
    %v245 = vld [vmem:[%s244] sm:$0xff]
    %v246 = vld [vmem:[%s244 + $0x8] sm:$0xff]
    %v247 = vld [vmem:[%s244 + $0x10] sm:$0xff]
    %v248 = vld [vmem:[%s244 + $0x18] sm:$0xff]
    %250 = vset.pattern.permute.xlu0 0
    %251 = vperm.xlu0 %250, %v245
    %v252 = vpop.permute.xlu0 %251
    %255 = vset.pattern.permute.xlu0 0
    %256 = vperm.xlu0 %255, %v246
    %v257 = vpop.permute.xlu0 %256
    %260 = vset.pattern.permute.xlu0 0
    %261 = vperm.xlu0 %260, %v247
    %v262 = vpop.permute.xlu0 %261
    %265 = vset.pattern.permute.xlu0 0
    %266 = vperm.xlu0 %265, %v248
    %v267 = vpop.permute.xlu0 %266
    %s269 = scalar_lea.vmem %s2, 256
    %v270 = vld [vmem:[%s269] sm:$0xff]
    %v271 = vld [vmem:[%s269 + $0x8] sm:$0xff]
    %v272 = vld [vmem:[%s269 + $0x10] sm:$0xff]
    %v273 = vld [vmem:[%s269 + $0x18] sm:$0xff]
    %275 = vset.pattern.permute.xlu0 0
    %276 = vperm.xlu0 %275, %v270
    %v277 = vpop.permute.xlu0 %276
    %280 = vset.pattern.permute.xlu0 0
    %281 = vperm.xlu0 %280, %v271
    %v282 = vpop.permute.xlu0 %281
    %285 = vset.pattern.permute.xlu0 0
    %286 = vperm.xlu0 %285, %v272
    %v287 = vpop.permute.xlu0 %286
    %290 = vset.pattern.permute.xlu0 0
    %291 = vperm.xlu0 %290, %v273
    %v292 = vpop.permute.xlu0 %291
    %vm299 = vcmask 1045504
    %v300 = vrot.slane 0.0, 2
    %v301 = vrot.slane %v66, 2
    %v302 = vsel %vm299, %v300, %v301
    %v303 = vrot.slane %v67, 2
    %v304 = vsel %vm299, %v301, %v303
    %v305 = vrot.slane %v68, 2
    %v306 = vsel %vm299, %v303, %v305
    %v307 = vrot.slane %v69, 2
    %v308 = vsel %vm299, %v305, %v307
    %v313 = vmul.f32 %v77, %v302
    %v314 = vmul.f32 %v82, %v304
    %v315 = vmul.f32 %v87, %v306
    %v316 = vmul.f32 %v92, %v308
    %s317 = sld [smem:[#allocation2]]
    %v318 = vstv %s317
    %v319 = vmul.f32 %v318, %v313
    %v320 = vmul.f32 %v318, %v314
    %v321 = vmul.f32 %v318, %v315
    %v322 = vmul.f32 %v318, %v316
    %s323 = sld [smem:[#allocation2 + $0x80]]
    %v324 = vstv %s323
    %v325 = vmul.f32 %v324, %v313
    %v326 = vmul.f32 %v324, %v314
    %v327 = vmul.f32 %v324, %v315
    %v328 = vmul.f32 %v324, %v316
    %s329 = sld [smem:[#allocation2 + $0x100]]
    %v330 = vstv %s329
    %v331 = vmul.f32 %v330, %v313
    %v332 = vmul.f32 %v330, %v314
    %v333 = vmul.f32 %v330, %v315
    %v334 = vmul.f32 %v330, %v316
    %s335 = sld [smem:[#allocation2 + $0x180]]
    %v336 = vstv %s335
    %v337 = vmul.f32 %v336, %v313
    %v338 = vmul.f32 %v336, %v314
    %v339 = vmul.f32 %v336, %v315
    %v340 = vmul.f32 %v336, %v316
    %s341 = sld [smem:[#allocation2 + $0x200]]
    %v342 = vstv %s341
    %v343 = vmul.f32 %v342, %v313
    %v344 = vmul.f32 %v342, %v314
    %v345 = vmul.f32 %v342, %v315
    %v346 = vmul.f32 %v342, %v316
    %s347 = sld [smem:[#allocation2 + $0x280]]
    %v348 = vstv %s347
    %v349 = vmul.f32 %v348, %v313
    %v350 = vmul.f32 %v348, %v314
    %v351 = vmul.f32 %v348, %v315
    %v352 = vmul.f32 %v348, %v316
    %vm353 = vcmask 1044480
    %v354 = vrot.slane 0.0, 3
    %v355 = vrot.slane %v66, 3
    %v356 = vsel %vm353, %v354, %v355
    %v357 = vrot.slane %v67, 3
    %v358 = vsel %vm353, %v355, %v357
    %v359 = vrot.slane %v68, 3
    %v360 = vsel %vm353, %v357, %v359
    %v361 = vrot.slane %v69, 3
    %v362 = vsel %vm353, %v359, %v361
    %v367 = vmul.f32 %v102, %v356
    %v368 = vmul.f32 %v107, %v358
    %v369 = vmul.f32 %v112, %v360
    %v370 = vmul.f32 %v117, %v362
    %s371 = sld [smem:[#allocation2 + $0x1]]
    %v372 = vstv %s371
    %v373 = vmul.f32 %v372, %v367
    %v374 = vmul.f32 %v372, %v368
    %v375 = vmul.f32 %v372, %v369
    %v376 = vmul.f32 %v372, %v370
    %v377 = vadd.f32 %v319, %v373
    %v378 = vadd.f32 %v320, %v374
    %v379 = vadd.f32 %v321, %v375
    %v380 = vadd.f32 %v322, %v376
    %s381 = sld [smem:[#allocation2 + $0x81]]
    %v382 = vstv %s381
    %v383 = vmul.f32 %v382, %v367
    %v384 = vmul.f32 %v382, %v368
    %v385 = vmul.f32 %v382, %v369
    %v386 = vmul.f32 %v382, %v370
    %v387 = vadd.f32 %v325, %v383
    %v388 = vadd.f32 %v326, %v384
    %v389 = vadd.f32 %v327, %v385
    %v390 = vadd.f32 %v328, %v386
    %s391 = sld [smem:[#allocation2 + $0x101]]
    %v392 = vstv %s391
    %v393 = vmul.f32 %v392, %v367
    %v394 = vmul.f32 %v392, %v368
    %v395 = vmul.f32 %v392, %v369
    %v396 = vmul.f32 %v392, %v370
    %v397 = vadd.f32 %v331, %v393
    %v398 = vadd.f32 %v332, %v394
    %v399 = vadd.f32 %v333, %v395
    %v400 = vadd.f32 %v334, %v396
    %s401 = sld [smem:[#allocation2 + $0x181]]
    %v402 = vstv %s401
    %v403 = vmul.f32 %v402, %v367
    %v404 = vmul.f32 %v402, %v368
    %v405 = vmul.f32 %v402, %v369
    %v406 = vmul.f32 %v402, %v370
    %v407 = vadd.f32 %v337, %v403
    %v408 = vadd.f32 %v338, %v404
    %v409 = vadd.f32 %v339, %v405
    %v410 = vadd.f32 %v340, %v406
    %s411 = sld [smem:[#allocation2 + $0x201]]
    %v412 = vstv %s411
    %v413 = vmul.f32 %v412, %v367
    %v414 = vmul.f32 %v412, %v368
    %v415 = vmul.f32 %v412, %v369
    %v416 = vmul.f32 %v412, %v370
    %v417 = vadd.f32 %v343, %v413
    %v418 = vadd.f32 %v344, %v414
    %v419 = vadd.f32 %v345, %v415
    %v420 = vadd.f32 %v346, %v416
    %s421 = sld [smem:[#allocation2 + $0x281]]
    %v422 = vstv %s421
    %v423 = vmul.f32 %v422, %v367
    %v424 = vmul.f32 %v422, %v368
    %v425 = vmul.f32 %v422, %v369
    %v426 = vmul.f32 %v422, %v370
    %v427 = vadd.f32 %v349, %v423
    %v428 = vadd.f32 %v350, %v424
    %v429 = vadd.f32 %v351, %v425
    %v430 = vadd.f32 %v352, %v426
    %vm431 = vcmask 1043456
    %v432 = vrot.slane 0.0, 4
    %v433 = vrot.slane %v66, 4
    %v434 = vsel %vm431, %v432, %v433
    %v435 = vrot.slane %v67, 4
    %v436 = vsel %vm431, %v433, %v435
    %v437 = vrot.slane %v68, 4
    %v438 = vsel %vm431, %v435, %v437
    %v439 = vrot.slane %v69, 4
    %v440 = vsel %vm431, %v437, %v439
    %v445 = vmul.f32 %v127, %v434
    %v446 = vmul.f32 %v132, %v436
    %v447 = vmul.f32 %v137, %v438
    %v448 = vmul.f32 %v142, %v440
    %s449 = sld [smem:[#allocation2 + $0x2]]
    %v450 = vstv %s449
    %v451 = vmul.f32 %v450, %v445
    %v452 = vmul.f32 %v450, %v446
    %v453 = vmul.f32 %v450, %v447
    %v454 = vmul.f32 %v450, %v448
    %v455 = vadd.f32 %v377, %v451
    %v456 = vadd.f32 %v378, %v452
    %v457 = vadd.f32 %v379, %v453
    %v458 = vadd.f32 %v380, %v454
    %s459 = sld [smem:[#allocation2 + $0x82]]
    %v460 = vstv %s459
    %v461 = vmul.f32 %v460, %v445
    %v462 = vmul.f32 %v460, %v446
    %v463 = vmul.f32 %v460, %v447
    %v464 = vmul.f32 %v460, %v448
    %v465 = vadd.f32 %v387, %v461
    %v466 = vadd.f32 %v388, %v462
    %v467 = vadd.f32 %v389, %v463
    %v468 = vadd.f32 %v390, %v464
    %s469 = sld [smem:[#allocation2 + $0x102]]
    %v470 = vstv %s469
    %v471 = vmul.f32 %v470, %v445
    %v472 = vmul.f32 %v470, %v446
    %v473 = vmul.f32 %v470, %v447
    %v474 = vmul.f32 %v470, %v448
    %v475 = vadd.f32 %v397, %v471
    %v476 = vadd.f32 %v398, %v472
    %v477 = vadd.f32 %v399, %v473
    %v478 = vadd.f32 %v400, %v474
    %s479 = sld [smem:[#allocation2 + $0x182]]
    %v480 = vstv %s479
    %v481 = vmul.f32 %v480, %v445
    %v482 = vmul.f32 %v480, %v446
    %v483 = vmul.f32 %v480, %v447
    %v484 = vmul.f32 %v480, %v448
    %v485 = vadd.f32 %v407, %v481
    %v486 = vadd.f32 %v408, %v482
    %v487 = vadd.f32 %v409, %v483
    %v488 = vadd.f32 %v410, %v484
    %s489 = sld [smem:[#allocation2 + $0x202]]
    %v490 = vstv %s489
    %v491 = vmul.f32 %v490, %v445
    %v492 = vmul.f32 %v490, %v446
    %v493 = vmul.f32 %v490, %v447
    %v494 = vmul.f32 %v490, %v448
    %v495 = vadd.f32 %v417, %v491
    %v496 = vadd.f32 %v418, %v492
    %v497 = vadd.f32 %v419, %v493
    %v498 = vadd.f32 %v420, %v494
    %s499 = sld [smem:[#allocation2 + $0x282]]
    %v500 = vstv %s499
    %v501 = vmul.f32 %v500, %v445
    %v502 = vmul.f32 %v500, %v446
    %v503 = vmul.f32 %v500, %v447
    %v504 = vmul.f32 %v500, %v448
    %v505 = vadd.f32 %v427, %v501
    %v506 = vadd.f32 %v428, %v502
    %v507 = vadd.f32 %v429, %v503
    %v508 = vadd.f32 %v430, %v504
    %vm509 = vcmask 1040384
    %v510 = vrot.slane 0.0, 7
    %v511 = vrot.slane %v66, 7
    %v512 = vsel %vm509, %v510, %v511
    %v513 = vrot.slane %v67, 7
    %v514 = vsel %vm509, %v511, %v513
    %v515 = vrot.slane %v68, 7
    %v516 = vsel %vm509, %v513, %v515
    %v517 = vrot.slane %v69, 7
    %v518 = vsel %vm509, %v515, %v517
    %v523 = vmul.f32 %v152, %v512
    %v524 = vmul.f32 %v157, %v514
    %v525 = vmul.f32 %v162, %v516
    %v526 = vmul.f32 %v167, %v518
    %s527 = sld [smem:[#allocation2 + $0x3]]
    %v528 = vstv %s527
    %v529 = vmul.f32 %v528, %v523
    %v530 = vmul.f32 %v528, %v524
    %v531 = vmul.f32 %v528, %v525
    %v532 = vmul.f32 %v528, %v526
    %v533 = vadd.f32 %v455, %v529
    %v534 = vadd.f32 %v456, %v530
    %v535 = vadd.f32 %v457, %v531
    %v536 = vadd.f32 %v458, %v532
    %s537 = sld [smem:[#allocation2 + $0x83]]
    %v538 = vstv %s537
    %v539 = vmul.f32 %v538, %v523
    %v540 = vmul.f32 %v538, %v524
    %v541 = vmul.f32 %v538, %v525
    %v542 = vmul.f32 %v538, %v526
    %v543 = vadd.f32 %v465, %v539
    %v544 = vadd.f32 %v466, %v540
    %v545 = vadd.f32 %v467, %v541
    %v546 = vadd.f32 %v468, %v542
    %s547 = sld [smem:[#allocation2 + $0x103]]
    %v548 = vstv %s547
    %v549 = vmul.f32 %v548, %v523
    %v550 = vmul.f32 %v548, %v524
    %v551 = vmul.f32 %v548, %v525
    %v552 = vmul.f32 %v548, %v526
    %v553 = vadd.f32 %v475, %v549
    %v554 = vadd.f32 %v476, %v550
    %v555 = vadd.f32 %v477, %v551
    %v556 = vadd.f32 %v478, %v552
    %s557 = sld [smem:[#allocation2 + $0x183]]
    %v558 = vstv %s557
    %v559 = vmul.f32 %v558, %v523
    %v560 = vmul.f32 %v558, %v524
    %v561 = vmul.f32 %v558, %v525
    %v562 = vmul.f32 %v558, %v526
    %v563 = vadd.f32 %v485, %v559
    %v564 = vadd.f32 %v486, %v560
    %v565 = vadd.f32 %v487, %v561
    %v566 = vadd.f32 %v488, %v562
    %s567 = sld [smem:[#allocation2 + $0x203]]
    %v568 = vstv %s567
    %v569 = vmul.f32 %v568, %v523
    %v570 = vmul.f32 %v568, %v524
    %v571 = vmul.f32 %v568, %v525
    %v572 = vmul.f32 %v568, %v526
    %v573 = vadd.f32 %v495, %v569
    %v574 = vadd.f32 %v496, %v570
    %v575 = vadd.f32 %v497, %v571
    %v576 = vadd.f32 %v498, %v572
    %s577 = sld [smem:[#allocation2 + $0x283]]
    %v578 = vstv %s577
    %v579 = vmul.f32 %v578, %v523
    %v580 = vmul.f32 %v578, %v524
    %v581 = vmul.f32 %v578, %v525
    %v582 = vmul.f32 %v578, %v526
    %v583 = vadd.f32 %v505, %v579
    %v584 = vadd.f32 %v506, %v580
    %v585 = vadd.f32 %v507, %v581
    %v586 = vadd.f32 %v508, %v582
    %v587 = vmul.f32 %v177, %v66
    %v588 = vmul.f32 %v182, %v67
    %v589 = vmul.f32 %v187, %v68
    %v590 = vmul.f32 %v192, %v69
    %s591 = sld [smem:[#allocation2 + $0x4]]
    %v592 = vstv %s591
    %v593 = vmul.f32 %v592, %v587
    %v594 = vmul.f32 %v592, %v588
    %v595 = vmul.f32 %v592, %v589
    %v596 = vmul.f32 %v592, %v590
    %v597 = vadd.f32 %v533, %v593
    %v598 = vadd.f32 %v534, %v594
    %v599 = vadd.f32 %v535, %v595
    %v600 = vadd.f32 %v536, %v596
    %s601 = sld [smem:[#allocation2 + $0x84]]
    %v602 = vstv %s601
    %v603 = vmul.f32 %v602, %v587
    %v604 = vmul.f32 %v602, %v588
    %v605 = vmul.f32 %v602, %v589
    %v606 = vmul.f32 %v602, %v590
    %v607 = vadd.f32 %v543, %v603
    %v608 = vadd.f32 %v544, %v604
    %v609 = vadd.f32 %v545, %v605
    %v610 = vadd.f32 %v546, %v606
    %s611 = sld [smem:[#allocation2 + $0x104]]
    %v612 = vstv %s611
    %v613 = vmul.f32 %v612, %v587
    %v614 = vmul.f32 %v612, %v588
    %v615 = vmul.f32 %v612, %v589
    %v616 = vmul.f32 %v612, %v590
    %v617 = vadd.f32 %v553, %v613
    %v618 = vadd.f32 %v554, %v614
    %v619 = vadd.f32 %v555, %v615
    %v620 = vadd.f32 %v556, %v616
    %s621 = sld [smem:[#allocation2 + $0x184]]
    %v622 = vstv %s621
    %v623 = vmul.f32 %v622, %v587
    %v624 = vmul.f32 %v622, %v588
    %v625 = vmul.f32 %v622, %v589
    %v626 = vmul.f32 %v622, %v590
    %v627 = vadd.f32 %v563, %v623
    %v628 = vadd.f32 %v564, %v624
    %v629 = vadd.f32 %v565, %v625
    %v630 = vadd.f32 %v566, %v626
    %s631 = sld [smem:[#allocation2 + $0x204]]
    %v632 = vstv %s631
    %v633 = vmul.f32 %v632, %v587
    %v634 = vmul.f32 %v632, %v588
    %v635 = vmul.f32 %v632, %v589
    %v636 = vmul.f32 %v632, %v590
    %v637 = vadd.f32 %v573, %v633
    %v638 = vadd.f32 %v574, %v634
    %v639 = vadd.f32 %v575, %v635
    %v640 = vadd.f32 %v576, %v636
    %s641 = sld [smem:[#allocation2 + $0x284]]
    %v642 = vstv %s641
    %v643 = vmul.f32 %v642, %v587
    %v644 = vmul.f32 %v642, %v588
    %v645 = vmul.f32 %v642, %v589
    %v646 = vmul.f32 %v642, %v590
    %v647 = vadd.f32 %v583, %v643
    %v648 = vadd.f32 %v584, %v644
    %v649 = vadd.f32 %v585, %v645
    %v650 = vadd.f32 %v586, %v646
    %vm651 = vcmask 1046528
    %v652 = vrot.slane %v66, 1
    %v653 = vrot.slane %v67, 1
    %v654 = vsel %vm651, %v652, %v653
    %v655 = vrot.slane %v68, 1
    %v656 = vsel %vm651, %v653, %v655
    %v657 = vrot.slane %v69, 1
    %v658 = vsel %vm651, %v655, %v657
    %v659 = vrot.slane 0.0, 1
    %v660 = vsel %vm651, %v657, %v659
    %v665 = vmul.f32 %v202, %v654
    %v666 = vmul.f32 %v207, %v656
    %v667 = vmul.f32 %v212, %v658
    %v668 = vmul.f32 %v217, %v660
    %s669 = sld [smem:[#allocation2 + $0x5]]
    %v670 = vstv %s669
    %v671 = vmul.f32 %v670, %v665
    %v672 = vmul.f32 %v670, %v666
    %v673 = vmul.f32 %v670, %v667
    %v674 = vmul.f32 %v670, %v668
    %v675 = vadd.f32 %v597, %v671
    %v676 = vadd.f32 %v598, %v672
    %v677 = vadd.f32 %v599, %v673
    %v678 = vadd.f32 %v600, %v674
    %s679 = sld [smem:[#allocation2 + $0x85]]
    %v680 = vstv %s679
    %v681 = vmul.f32 %v680, %v665
    %v682 = vmul.f32 %v680, %v666
    %v683 = vmul.f32 %v680, %v667
    %v684 = vmul.f32 %v680, %v668
    %v685 = vadd.f32 %v607, %v681
    %v686 = vadd.f32 %v608, %v682
    %v687 = vadd.f32 %v609, %v683
    %v688 = vadd.f32 %v610, %v684
    %s689 = sld [smem:[#allocation2 + $0x105]]
    %v690 = vstv %s689
    %v691 = vmul.f32 %v690, %v665
    %v692 = vmul.f32 %v690, %v666
    %v693 = vmul.f32 %v690, %v667
    %v694 = vmul.f32 %v690, %v668
    %v695 = vadd.f32 %v617, %v691
    %v696 = vadd.f32 %v618, %v692
    %v697 = vadd.f32 %v619, %v693
    %v698 = vadd.f32 %v620, %v694
    %s699 = sld [smem:[#allocation2 + $0x185]]
    %v700 = vstv %s699
    %v701 = vmul.f32 %v700, %v665
    %v702 = vmul.f32 %v700, %v666
    %v703 = vmul.f32 %v700, %v667
    %v704 = vmul.f32 %v700, %v668
    %v705 = vadd.f32 %v627, %v701
    %v706 = vadd.f32 %v628, %v702
    %v707 = vadd.f32 %v629, %v703
    %v708 = vadd.f32 %v630, %v704
    %s709 = sld [smem:[#allocation2 + $0x205]]
    %v710 = vstv %s709
    %v711 = vmul.f32 %v710, %v665
    %v712 = vmul.f32 %v710, %v666
    %v713 = vmul.f32 %v710, %v667
    %v714 = vmul.f32 %v710, %v668
    %v715 = vadd.f32 %v637, %v711
    %v716 = vadd.f32 %v638, %v712
    %v717 = vadd.f32 %v639, %v713
    %v718 = vadd.f32 %v640, %v714
    %s719 = sld [smem:[#allocation2 + $0x285]]
    %v720 = vstv %s719
    %v721 = vmul.f32 %v720, %v665
    %v722 = vmul.f32 %v720, %v666
    %v723 = vmul.f32 %v720, %v667
    %v724 = vmul.f32 %v720, %v668
    %v725 = vadd.f32 %v647, %v721
    %v726 = vadd.f32 %v648, %v722
    %v727 = vadd.f32 %v649, %v723
    %v728 = vadd.f32 %v650, %v724
    %v729 = vsel %vm431, %v439, %v432
    %v731 = vmul.f32 %v227, %v436
    %v732 = vmul.f32 %v232, %v438
    %v733 = vmul.f32 %v237, %v440
    %v734 = vmul.f32 %v242, %v729
    %s735 = sld [smem:[#allocation2 + $0x6]]
    %v736 = vstv %s735
    %v737 = vmul.f32 %v736, %v731
    %v738 = vmul.f32 %v736, %v732
    %v739 = vmul.f32 %v736, %v733
    %v740 = vmul.f32 %v736, %v734
    %v741 = vadd.f32 %v675, %v737
    %v742 = vadd.f32 %v676, %v738
    %v743 = vadd.f32 %v677, %v739
    %v744 = vadd.f32 %v678, %v740
    %s745 = sld [smem:[#allocation2 + $0x86]]
    %v746 = vstv %s745
    %v747 = vmul.f32 %v746, %v731
    %v748 = vmul.f32 %v746, %v732
    %v749 = vmul.f32 %v746, %v733
    %v750 = vmul.f32 %v746, %v734
    %v751 = vadd.f32 %v685, %v747
    %v752 = vadd.f32 %v686, %v748
    %v753 = vadd.f32 %v687, %v749
    %v754 = vadd.f32 %v688, %v750
    %s755 = sld [smem:[#allocation2 + $0x106]]
    %v756 = vstv %s755
    %v757 = vmul.f32 %v756, %v731
    %v758 = vmul.f32 %v756, %v732
    %v759 = vmul.f32 %v756, %v733
    %v760 = vmul.f32 %v756, %v734
    %v761 = vadd.f32 %v695, %v757
    %v762 = vadd.f32 %v696, %v758
    %v763 = vadd.f32 %v697, %v759
    %v764 = vadd.f32 %v698, %v760
    %s765 = sld [smem:[#allocation2 + $0x186]]
    %v766 = vstv %s765
    %v767 = vmul.f32 %v766, %v731
    %v768 = vmul.f32 %v766, %v732
    %v769 = vmul.f32 %v766, %v733
    %v770 = vmul.f32 %v766, %v734
    %v771 = vadd.f32 %v705, %v767
    %v772 = vadd.f32 %v706, %v768
    %v773 = vadd.f32 %v707, %v769
    %v774 = vadd.f32 %v708, %v770
    %s775 = sld [smem:[#allocation2 + $0x206]]
    %v776 = vstv %s775
    %v777 = vmul.f32 %v776, %v731
    %v778 = vmul.f32 %v776, %v732
    %v779 = vmul.f32 %v776, %v733
    %v780 = vmul.f32 %v776, %v734
    %v781 = vadd.f32 %v715, %v777
    %v782 = vadd.f32 %v716, %v778
    %v783 = vadd.f32 %v717, %v779
    %v784 = vadd.f32 %v718, %v780
    %s785 = sld [smem:[#allocation2 + $0x286]]
    %v786 = vstv %s785
    %v787 = vmul.f32 %v786, %v731
    %v788 = vmul.f32 %v786, %v732
    %v789 = vmul.f32 %v786, %v733
    %v790 = vmul.f32 %v786, %v734
    %v791 = vadd.f32 %v725, %v787
    %v792 = vadd.f32 %v726, %v788
    %v793 = vadd.f32 %v727, %v789
    %v794 = vadd.f32 %v728, %v790
    %vm795 = vcmask 1042432
    %v796 = vrot.slane %v66, 5
    %v797 = vrot.slane %v67, 5
    %v798 = vsel %vm795, %v796, %v797
    %v799 = vrot.slane %v68, 5
    %v800 = vsel %vm795, %v797, %v799
    %v801 = vrot.slane %v69, 5
    %v802 = vsel %vm795, %v799, %v801
    %v803 = vrot.slane 0.0, 5
    %v804 = vsel %vm795, %v801, %v803
    %v809 = vmul.f32 %v252, %v798
    %v810 = vmul.f32 %v257, %v800
    %v811 = vmul.f32 %v262, %v802
    %v812 = vmul.f32 %v267, %v804
    %s813 = sld [smem:[#allocation2 + $0x7]]
    %v814 = vstv %s813
    %v815 = vmul.f32 %v814, %v809
    %v816 = vmul.f32 %v814, %v810
    %v817 = vmul.f32 %v814, %v811
    %v818 = vmul.f32 %v814, %v812
    %v819 = vadd.f32 %v741, %v815
    %v820 = vadd.f32 %v742, %v816
    %v821 = vadd.f32 %v743, %v817
    %v822 = vadd.f32 %v744, %v818
    %s823 = sld [smem:[#allocation2 + $0x87]]
    %v824 = vstv %s823
    %v825 = vmul.f32 %v824, %v809
    %v826 = vmul.f32 %v824, %v810
    %v827 = vmul.f32 %v824, %v811
    %v828 = vmul.f32 %v824, %v812
    %v829 = vadd.f32 %v751, %v825
    %v830 = vadd.f32 %v752, %v826
    %v831 = vadd.f32 %v753, %v827
    %v832 = vadd.f32 %v754, %v828
    %s833 = sld [smem:[#allocation2 + $0x107]]
    %v834 = vstv %s833
    %v835 = vmul.f32 %v834, %v809
    %v836 = vmul.f32 %v834, %v810
    %v837 = vmul.f32 %v834, %v811
    %v838 = vmul.f32 %v834, %v812
    %v839 = vadd.f32 %v761, %v835
    %v840 = vadd.f32 %v762, %v836
    %v841 = vadd.f32 %v763, %v837
    %v842 = vadd.f32 %v764, %v838
    %s843 = sld [smem:[#allocation2 + $0x187]]
    %v844 = vstv %s843
    %v845 = vmul.f32 %v844, %v809
    %v846 = vmul.f32 %v844, %v810
    %v847 = vmul.f32 %v844, %v811
    %v848 = vmul.f32 %v844, %v812
    %v849 = vadd.f32 %v771, %v845
    %v850 = vadd.f32 %v772, %v846
    %v851 = vadd.f32 %v773, %v847
    %v852 = vadd.f32 %v774, %v848
    %s853 = sld [smem:[#allocation2 + $0x207]]
    %v854 = vstv %s853
    %v855 = vmul.f32 %v854, %v809
    %v856 = vmul.f32 %v854, %v810
    %v857 = vmul.f32 %v854, %v811
    %v858 = vmul.f32 %v854, %v812
    %v859 = vadd.f32 %v781, %v855
    %v860 = vadd.f32 %v782, %v856
    %v861 = vadd.f32 %v783, %v857
    %v862 = vadd.f32 %v784, %v858
    %s863 = sld [smem:[#allocation2 + $0x287]]
    %v864 = vstv %s863
    %v865 = vmul.f32 %v864, %v809
    %v866 = vmul.f32 %v864, %v810
    %v867 = vmul.f32 %v864, %v811
    %v868 = vmul.f32 %v864, %v812
    %v869 = vadd.f32 %v791, %v865
    %v870 = vadd.f32 %v792, %v866
    %v871 = vadd.f32 %v793, %v867
    %v872 = vadd.f32 %v794, %v868
    %vm873 = vcmask 1041408
    %v874 = vrot.slane %v66, 6
    %v875 = vrot.slane %v67, 6
    %v876 = vsel %vm873, %v874, %v875
    %v877 = vrot.slane %v68, 6
    %v878 = vsel %vm873, %v875, %v877
    %v879 = vrot.slane %v69, 6
    %v880 = vsel %vm873, %v877, %v879
    %v881 = vrot.slane 0.0, 6
    %v882 = vsel %vm873, %v879, %v881
    %v887 = vmul.f32 %v277, %v876
    %v888 = vmul.f32 %v282, %v878
    %v889 = vmul.f32 %v287, %v880
    %v890 = vmul.f32 %v292, %v882
    %s891 = sld [smem:[#allocation2 + $0x8]]
    %v892 = vstv %s891
    %v893 = vmul.f32 %v892, %v887
    %v894 = vmul.f32 %v892, %v888
    %v895 = vmul.f32 %v892, %v889
    %v896 = vmul.f32 %v892, %v890
    %v897 = vadd.f32 %v819, %v893
    %v898 = vadd.f32 %v820, %v894
    %v899 = vadd.f32 %v821, %v895
    %v900 = vadd.f32 %v822, %v896
    %s901 = sld [smem:[#allocation2 + $0x88]]
    %v902 = vstv %s901
    %v903 = vmul.f32 %v902, %v887
    %v904 = vmul.f32 %v902, %v888
    %v905 = vmul.f32 %v902, %v889
    %v906 = vmul.f32 %v902, %v890
    %v907 = vadd.f32 %v829, %v903
    %v908 = vadd.f32 %v830, %v904
    %v909 = vadd.f32 %v831, %v905
    %v910 = vadd.f32 %v832, %v906
    %s911 = sld [smem:[#allocation2 + $0x108]]
    %v912 = vstv %s911
    %v913 = vmul.f32 %v912, %v887
    %v914 = vmul.f32 %v912, %v888
    %v915 = vmul.f32 %v912, %v889
    %v916 = vmul.f32 %v912, %v890
    %v917 = vadd.f32 %v839, %v913
    %v918 = vadd.f32 %v840, %v914
    %v919 = vadd.f32 %v841, %v915
    %v920 = vadd.f32 %v842, %v916
    %s921 = sld [smem:[#allocation2 + $0x188]]
    %v922 = vstv %s921
    %v923 = vmul.f32 %v922, %v887
    %v924 = vmul.f32 %v922, %v888
    %v925 = vmul.f32 %v922, %v889
    %v926 = vmul.f32 %v922, %v890
    %v927 = vadd.f32 %v849, %v923
    %v928 = vadd.f32 %v850, %v924
    %v929 = vadd.f32 %v851, %v925
    %v930 = vadd.f32 %v852, %v926
    %s931 = sld [smem:[#allocation2 + $0x208]]
    %v932 = vstv %s931
    %v933 = vmul.f32 %v932, %v887
    %v934 = vmul.f32 %v932, %v888
    %v935 = vmul.f32 %v932, %v889
    %v936 = vmul.f32 %v932, %v890
    %v937 = vadd.f32 %v859, %v933
    %v938 = vadd.f32 %v860, %v934
    %v939 = vadd.f32 %v861, %v935
    %v940 = vadd.f32 %v862, %v936
    %s941 = sld [smem:[#allocation2 + $0x288]]
    %v942 = vstv %s941
    %v943 = vmul.f32 %v942, %v887
    %v944 = vmul.f32 %v942, %v888
    %v945 = vmul.f32 %v942, %v889
    %v946 = vmul.f32 %v942, %v890
    %v947 = vadd.f32 %v869, %v943
    %v948 = vadd.f32 %v870, %v944
    %v949 = vadd.f32 %v871, %v945
    %v950 = vadd.f32 %v872, %v946
    %s951 = sld [smem:[#allocation4]]
    %v952 = vstv %s951
    %v953 = vadd.f32 %v897, %v952
    %v954 = vadd.f32 %v898, %v952
    %v955 = vadd.f32 %v899, %v952
    %v956 = vadd.f32 %v900, %v952
    %s957 = sld [smem:[#allocation4 + $0x1]]
    %v958 = vstv %s957
    %v959 = vadd.f32 %v907, %v958
    %v960 = vadd.f32 %v908, %v958
    %v961 = vadd.f32 %v909, %v958
    %v962 = vadd.f32 %v910, %v958
    %v963 = vmax.f32 %v959, 0.0
    %v964 = vmax.f32 %v960, 0.0
    %v965 = vmax.f32 %v961, 0.0
    %v966 = vmax.f32 %v962, 0.0
    %v967 = vadd.f32 %v963, 1e-05
    %v968 = vadd.f32 %v964, 1e-05
    %v969 = vadd.f32 %v965, 1e-05
    %v970 = vadd.f32 %v966, 1e-05
    %s971 = sld [smem:[#allocation4 + $0x2]]
    %v972 = vstv %s971
    %v973 = vadd.f32 %v917, %v972
    %v974 = vadd.f32 %v918, %v972
    %v975 = vadd.f32 %v919, %v972
    %v976 = vadd.f32 %v920, %v972
    %v977 = vmax.f32 %v973, 0.0
    %v978 = vmax.f32 %v974, 0.0
    %v979 = vmax.f32 %v975, 0.0
    %v980 = vmax.f32 %v976, 0.0
    %s981 = sld [smem:[#allocation4 + $0x3]]
    %v982 = vstv %s981
    %v983 = vadd.f32 %v927, %v982
    %v984 = vadd.f32 %v928, %v982
    %v985 = vadd.f32 %v929, %v982
    %v986 = vadd.f32 %v930, %v982
    %v987 = vmax.f32 %v983, 0.0
    %v988 = vmax.f32 %v984, 0.0
    %v989 = vmax.f32 %v985, 0.0
    %v990 = vmax.f32 %v986, 0.0
    %s991 = sld [smem:[#allocation4 + $0x4]]
    %v992 = vstv %s991
    %v993 = vadd.f32 %v937, %v992
    %v994 = vadd.f32 %v938, %v992
    %v995 = vadd.f32 %v939, %v992
    %v996 = vadd.f32 %v940, %v992
    %v997 = vmax.f32 %v993, 0.0
    %v998 = vmax.f32 %v994, 0.0
    %v999 = vmax.f32 %v995, 0.0
    %v1000 = vmax.f32 %v996, 0.0
    %s1001 = sld [smem:[#allocation4 + $0x5]]
    %v1002 = vstv %s1001
    %v1003 = vadd.f32 %v947, %v1002
    %v1004 = vadd.f32 %v948, %v1002
    %v1005 = vadd.f32 %v949, %v1002
    %v1006 = vadd.f32 %v950, %v1002
    %v1007 = vmax.f32 %v1003, 0.0
    %v1008 = vmax.f32 %v1004, 0.0
    %v1009 = vmax.f32 %v1005, 0.0
    %v1010 = vmax.f32 %v1006, 0.0
    %1011 = vst [vmem:[%s8] sm:$0xff] %v953
    %1012 = vst [vmem:[%s8 + $0x8] sm:$0xff] %v954
    %1013 = vst [vmem:[%s8 + $0x10] sm:$0xff] %v955
    %1014 = vst [vmem:[%s8 + $0x18] sm:$0xff] %v956
    %v1015 = vlog2.pop %v967
    %v1016 = vmul.f32 %v1015, 0.6931472
    %v1017 = vlog2.pop %v968
    %v1018 = vmul.f32 %v1017, 0.6931472
    %v1019 = vlog2.pop %v969
    %v1020 = vmul.f32 %v1019, 0.6931472
    %v1021 = vlog2.pop %v970
    %v1022 = vmul.f32 %v1021, 0.6931472
    %v1023 = vsub.f32 0.0, %v1016
    %v1024 = vsub.f32 0.0, %v1018
    %v1025 = vsub.f32 0.0, %v1020
    %v1026 = vsub.f32 0.0, %v1022
    %1027 = vst [vmem:[%s9] sm:$0xff] %v1023
    %1028 = vst [vmem:[%s9 + $0x8] sm:$0xff] %v1024
    %1029 = vst [vmem:[%s9 + $0x10] sm:$0xff] %v1025
    %1030 = vst [vmem:[%s9 + $0x18] sm:$0xff] %v1026
    %1031 = vst [vmem:[%s10] sm:$0xff] %v977
    %1032 = vst [vmem:[%s10 + $0x8] sm:$0xff] %v978
    %1033 = vst [vmem:[%s10 + $0x10] sm:$0xff] %v979
    %1034 = vst [vmem:[%s10 + $0x18] sm:$0xff] %v980
    %s1035 = scalar_lea.vmem %s10, 32
    %1036 = vst [vmem:[%s1035] sm:$0xff] %v987
    %1037 = vst [vmem:[%s1035 + $0x8] sm:$0xff] %v988
    %1038 = vst [vmem:[%s1035 + $0x10] sm:$0xff] %v989
    %1039 = vst [vmem:[%s1035 + $0x18] sm:$0xff] %v990
    %s1040 = scalar_lea.vmem %s10, 64
    %1041 = vst [vmem:[%s1040] sm:$0xff] %v997
    %1042 = vst [vmem:[%s1040 + $0x8] sm:$0xff] %v998
    %1043 = vst [vmem:[%s1040 + $0x10] sm:$0xff] %v999
    %1044 = vst [vmem:[%s1040 + $0x18] sm:$0xff] %v1000
    %s1045 = scalar_lea.vmem %s10, 96
    %1046 = vst [vmem:[%s1045] sm:$0xff] %v1007
    %1047 = vst [vmem:[%s1045 + $0x8] sm:$0xff] %v1008
    %1048 = vst [vmem:[%s1045 + $0x10] sm:$0xff] %v1009
    %1049 = vst [vmem:[%s1045 + $0x18] sm:$0xff] %v1010
    %v1050 = vld [vmem:[%s1] sm:$0xff]
    %v1051 = vld [vmem:[%s1 + $0x8] sm:$0xff]
    %v1052 = vld [vmem:[%s1 + $0x10] sm:$0xff]
    %v1053 = vld [vmem:[%s1 + $0x18] sm:$0xff]
    %v1054 = vrsqrt.pop %v967
    %v1055 = vrsqrt.pop %v968
    %v1056 = vrsqrt.pop %v969
    %v1057 = vrsqrt.pop %v970
    %v1058 = vmul.f32 %v1050, %v1054
    %v1059 = vmul.f32 %v1051, %v1055
    %v1060 = vmul.f32 %v1052, %v1056
    %v1061 = vmul.f32 %v1053, %v1057
    %v1062 = vadd.f32 %v953, %v1058
    %v1063 = vadd.f32 %v954, %v1059
    %v1064 = vadd.f32 %v955, %v1060
    %v1065 = vadd.f32 %v956, %v1061
    %v1066 = vadd.f32 %v977, %v987
    %v1067 = vadd.f32 %v978, %v988
    %v1068 = vadd.f32 %v979, %v989
    %v1069 = vadd.f32 %v980, %v990
    %v1070 = vadd.f32 %v1066, %v997
    %v1071 = vadd.f32 %v1067, %v998
    %v1072 = vadd.f32 %v1068, %v999
    %v1073 = vadd.f32 %v1069, %v1000
    %v1074 = vadd.f32 %v1070, %v1007
    %v1075 = vadd.f32 %v1071, %v1008
    %v1076 = vadd.f32 %v1072, %v1009
    %v1077 = vadd.f32 %v1073, %v1010
    %v1078 = vadd.f32 %v1074, %v967
    %v1079 = vadd.f32 %v1075, %v968
    %v1080 = vadd.f32 %v1076, %v969
    %v1081 = vadd.f32 %v1077, %v970
    %v1082 = vrsqrt.pop %v1078
    %v1083 = vrsqrt.pop %v1079
    %v1084 = vrsqrt.pop %v1080
    %v1085 = vrsqrt.pop %v1081
    %v1086 = vmul.f32 %v1082, %v1082
    %v1087 = vmul.f32 %v1083, %v1083
    %v1088 = vmul.f32 %v1084, %v1084
    %v1089 = vmul.f32 %v1085, %v1085
    %v1090 = vmul.f32 %v967, %v953
    %v1091 = vmul.f32 %v968, %v954
    %v1092 = vmul.f32 %v969, %v955
    %v1093 = vmul.f32 %v970, %v956
    %v1094 = vmul.f32 %v977, %v252
    %v1095 = vmul.f32 %v978, %v257
    %v1096 = vmul.f32 %v979, %v262
    %v1097 = vmul.f32 %v980, %v267
    %v1098 = vmul.f32 %v987, %v202
    %v1099 = vmul.f32 %v988, %v207
    %v1100 = vmul.f32 %v989, %v212
    %v1101 = vmul.f32 %v990, %v217
    %v1102 = vmul.f32 %v997, %v102
    %v1103 = vmul.f32 %v998, %v107
    %v1104 = vmul.f32 %v999, %v112
    %v1105 = vmul.f32 %v1000, %v117
    %v1106 = vmul.f32 %v1007, %v152
    %v1107 = vmul.f32 %v1008, %v157
    %v1108 = vmul.f32 %v1009, %v162
    %v1109 = vmul.f32 %v1010, %v167
    %v1114 = vrot.slane %v1062, 5
    %v1115 = vrot.slane %v1063, 5
    %v1116 = vsel %vm795, %v1114, %v1115
    %v1117 = vrot.slane %v1064, 5
    %v1118 = vsel %vm795, %v1115, %v1117
    %v1119 = vrot.slane %v1065, 5
    %v1120 = vsel %vm795, %v1117, %v1119
    %v1121 = vsel %vm795, %v1119, %v803
    %v1126 = vmul.f32 %v1094, %v1116
    %v1127 = vmul.f32 %v1095, %v1118
    %v1128 = vmul.f32 %v1096, %v1120
    %v1129 = vmul.f32 %v1097, %v1121
    %v1130 = vadd.f32 %v1090, %v1126
    %v1131 = vadd.f32 %v1091, %v1127
    %v1132 = vadd.f32 %v1092, %v1128
    %v1133 = vadd.f32 %v1093, %v1129
    %v1134 = vrot.slane %v1062, 1
    %v1135 = vrot.slane %v1063, 1
    %v1136 = vsel %vm651, %v1134, %v1135
    %v1137 = vrot.slane %v1064, 1
    %v1138 = vsel %vm651, %v1135, %v1137
    %v1139 = vrot.slane %v1065, 1
    %v1140 = vsel %vm651, %v1137, %v1139
    %v1141 = vsel %vm651, %v1139, %v659
    %v1146 = vmul.f32 %v1098, %v1136
    %v1147 = vmul.f32 %v1099, %v1138
    %v1148 = vmul.f32 %v1100, %v1140
    %v1149 = vmul.f32 %v1101, %v1141
    %v1150 = vadd.f32 %v1130, %v1146
    %v1151 = vadd.f32 %v1131, %v1147
    %v1152 = vadd.f32 %v1132, %v1148
    %v1153 = vadd.f32 %v1133, %v1149
    %v1154 = vrot.slane %v1062, 3
    %v1155 = vsel %vm353, %v354, %v1154
    %v1156 = vrot.slane %v1063, 3
    %v1157 = vsel %vm353, %v1154, %v1156
    %v1158 = vrot.slane %v1064, 3
    %v1159 = vsel %vm353, %v1156, %v1158
    %v1160 = vrot.slane %v1065, 3
    %v1161 = vsel %vm353, %v1158, %v1160
    %v1166 = vmul.f32 %v1102, %v1155
    %v1167 = vmul.f32 %v1103, %v1157
    %v1168 = vmul.f32 %v1104, %v1159
    %v1169 = vmul.f32 %v1105, %v1161
    %v1170 = vadd.f32 %v1150, %v1166
    %v1171 = vadd.f32 %v1151, %v1167
    %v1172 = vadd.f32 %v1152, %v1168
    %v1173 = vadd.f32 %v1153, %v1169
    %v1174 = vrot.slane %v1062, 7
    %v1175 = vsel %vm509, %v510, %v1174
    %v1176 = vrot.slane %v1063, 7
    %v1177 = vsel %vm509, %v1174, %v1176
    %v1178 = vrot.slane %v1064, 7
    %v1179 = vsel %vm509, %v1176, %v1178
    %v1180 = vrot.slane %v1065, 7
    %v1181 = vsel %vm509, %v1178, %v1180
    %v1186 = vmul.f32 %v1106, %v1175
    %v1187 = vmul.f32 %v1107, %v1177
    %v1188 = vmul.f32 %v1108, %v1179
    %v1189 = vmul.f32 %v1109, %v1181
    %v1190 = vadd.f32 %v1170, %v1186
    %v1191 = vadd.f32 %v1171, %v1187
    %v1192 = vadd.f32 %v1172, %v1188
    %v1193 = vadd.f32 %v1173, %v1189
    %v1194 = vmul.f32 %v1190, %v1086
    %v1195 = vmul.f32 %v1191, %v1087
    %v1196 = vmul.f32 %v1192, %v1088
    %v1197 = vmul.f32 %v1193, %v1089
    %s1198 = scalar_lea.vmem %s1, 32
    %v1199 = vld [vmem:[%s1198] sm:$0xff]
    %v1200 = vld [vmem:[%s1198 + $0x8] sm:$0xff]
    %v1201 = vld [vmem:[%s1198 + $0x10] sm:$0xff]
    %v1202 = vld [vmem:[%s1198 + $0x18] sm:$0xff]
    %v1203 = vmul.f32 %v1199, %v1082
    %v1204 = vmul.f32 %v1200, %v1083
    %v1205 = vmul.f32 %v1201, %v1084
    %v1206 = vmul.f32 %v1202, %v1085
    %v1207 = vadd.f32 %v1194, %v1203
    %v1208 = vadd.f32 %v1195, %v1204
    %v1209 = vadd.f32 %v1196, %v1205
    %v1210 = vadd.f32 %v1197, %v1206
    %v1215 = vrot.slane %v1207, 5
    %v1216 = vrot.slane %v1208, 5
    %v1217 = vsel %vm795, %v1215, %v1216
    %v1218 = vrot.slane %v1209, 5
    %v1219 = vsel %vm795, %v1216, %v1218
    %v1220 = vrot.slane %v1210, 5
    %v1221 = vsel %vm795, %v1218, %v1220
    %v1222 = vsel %vm795, %v1220, %v803
    %v1227 = vmul.f32 %v1094, %v1217
    %v1228 = vmul.f32 %v1095, %v1219
    %v1229 = vmul.f32 %v1096, %v1221
    %v1230 = vmul.f32 %v1097, %v1222
    %v1231 = vadd.f32 %v1090, %v1227
    %v1232 = vadd.f32 %v1091, %v1228
    %v1233 = vadd.f32 %v1092, %v1229
    %v1234 = vadd.f32 %v1093, %v1230
    %v1235 = vrot.slane %v1207, 1
    %v1236 = vrot.slane %v1208, 1
    %v1237 = vsel %vm651, %v1235, %v1236
    %v1238 = vrot.slane %v1209, 1
    %v1239 = vsel %vm651, %v1236, %v1238
    %v1240 = vrot.slane %v1210, 1
    %v1241 = vsel %vm651, %v1238, %v1240
    %v1242 = vsel %vm651, %v1240, %v659
    %v1247 = vmul.f32 %v1098, %v1237
    %v1248 = vmul.f32 %v1099, %v1239
    %v1249 = vmul.f32 %v1100, %v1241
    %v1250 = vmul.f32 %v1101, %v1242
    %v1251 = vadd.f32 %v1231, %v1247
    %v1252 = vadd.f32 %v1232, %v1248
    %v1253 = vadd.f32 %v1233, %v1249
    %v1254 = vadd.f32 %v1234, %v1250
    %v1255 = vrot.slane %v1207, 3
    %v1256 = vsel %vm353, %v354, %v1255
    %v1257 = vrot.slane %v1208, 3
    %v1258 = vsel %vm353, %v1255, %v1257
    %v1259 = vrot.slane %v1209, 3
    %v1260 = vsel %vm353, %v1257, %v1259
    %v1261 = vrot.slane %v1210, 3
    %v1262 = vsel %vm353, %v1259, %v1261
    %v1267 = vmul.f32 %v1102, %v1256
    %v1268 = vmul.f32 %v1103, %v1258
    %v1269 = vmul.f32 %v1104, %v1260
    %v1270 = vmul.f32 %v1105, %v1262
    %v1271 = vadd.f32 %v1251, %v1267
    %v1272 = vadd.f32 %v1252, %v1268
    %v1273 = vadd.f32 %v1253, %v1269
    %v1274 = vadd.f32 %v1254, %v1270
    %v1275 = vrot.slane %v1207, 7
    %v1276 = vsel %vm509, %v510, %v1275
    %v1277 = vrot.slane %v1208, 7
    %v1278 = vsel %vm509, %v1275, %v1277
    %v1279 = vrot.slane %v1209, 7
    %v1280 = vsel %vm509, %v1277, %v1279
    %v1281 = vrot.slane %v1210, 7
    %v1282 = vsel %vm509, %v1279, %v1281
    %v1287 = vmul.f32 %v1106, %v1276
    %v1288 = vmul.f32 %v1107, %v1278
    %v1289 = vmul.f32 %v1108, %v1280
    %v1290 = vmul.f32 %v1109, %v1282
    %v1291 = vadd.f32 %v1271, %v1287
    %v1292 = vadd.f32 %v1272, %v1288
    %v1293 = vadd.f32 %v1273, %v1289
    %v1294 = vadd.f32 %v1274, %v1290
    %v1295 = vmul.f32 %v1291, %v1086
    %v1296 = vmul.f32 %v1292, %v1087
    %v1297 = vmul.f32 %v1293, %v1088
    %v1298 = vmul.f32 %v1294, %v1089
    %s1299 = scalar_lea.vmem %s1, 64
    %v1300 = vld [vmem:[%s1299] sm:$0xff]
    %v1301 = vld [vmem:[%s1299 + $0x8] sm:$0xff]
    %v1302 = vld [vmem:[%s1299 + $0x10] sm:$0xff]
    %v1303 = vld [vmem:[%s1299 + $0x18] sm:$0xff]
    %v1304 = vmul.f32 %v1300, %v1082
    %v1305 = vmul.f32 %v1301, %v1083
    %v1306 = vmul.f32 %v1302, %v1084
    %v1307 = vmul.f32 %v1303, %v1085
    %v1308 = vadd.f32 %v1295, %v1304
    %v1309 = vadd.f32 %v1296, %v1305
    %v1310 = vadd.f32 %v1297, %v1306
    %v1311 = vadd.f32 %v1298, %v1307
    %v1316 = vrot.slane %v1308, 5
    %v1317 = vrot.slane %v1309, 5
    %v1318 = vsel %vm795, %v1316, %v1317
    %v1319 = vrot.slane %v1310, 5
    %v1320 = vsel %vm795, %v1317, %v1319
    %v1321 = vrot.slane %v1311, 5
    %v1322 = vsel %vm795, %v1319, %v1321
    %v1323 = vsel %vm795, %v1321, %v803
    %v1328 = vmul.f32 %v1094, %v1318
    %v1329 = vmul.f32 %v1095, %v1320
    %v1330 = vmul.f32 %v1096, %v1322
    %v1331 = vmul.f32 %v1097, %v1323
    %v1332 = vadd.f32 %v1090, %v1328
    %v1333 = vadd.f32 %v1091, %v1329
    %v1334 = vadd.f32 %v1092, %v1330
    %v1335 = vadd.f32 %v1093, %v1331
    %v1336 = vrot.slane %v1308, 1
    %v1337 = vrot.slane %v1309, 1
    %v1338 = vsel %vm651, %v1336, %v1337
    %v1339 = vrot.slane %v1310, 1
    %v1340 = vsel %vm651, %v1337, %v1339
    %v1341 = vrot.slane %v1311, 1
    %v1342 = vsel %vm651, %v1339, %v1341
    %v1343 = vsel %vm651, %v1341, %v659
    %v1348 = vmul.f32 %v1098, %v1338
    %v1349 = vmul.f32 %v1099, %v1340
    %v1350 = vmul.f32 %v1100, %v1342
    %v1351 = vmul.f32 %v1101, %v1343
    %v1352 = vadd.f32 %v1332, %v1348
    %v1353 = vadd.f32 %v1333, %v1349
    %v1354 = vadd.f32 %v1334, %v1350
    %v1355 = vadd.f32 %v1335, %v1351
    %v1356 = vrot.slane %v1308, 3
    %v1357 = vsel %vm353, %v354, %v1356
    %v1358 = vrot.slane %v1309, 3
    %v1359 = vsel %vm353, %v1356, %v1358
    %v1360 = vrot.slane %v1310, 3
    %v1361 = vsel %vm353, %v1358, %v1360
    %v1362 = vrot.slane %v1311, 3
    %v1363 = vsel %vm353, %v1360, %v1362
    %v1368 = vmul.f32 %v1102, %v1357
    %v1369 = vmul.f32 %v1103, %v1359
    %v1370 = vmul.f32 %v1104, %v1361
    %v1371 = vmul.f32 %v1105, %v1363
    %v1372 = vadd.f32 %v1352, %v1368
    %v1373 = vadd.f32 %v1353, %v1369
    %v1374 = vadd.f32 %v1354, %v1370
    %v1375 = vadd.f32 %v1355, %v1371
    %v1376 = vrot.slane %v1308, 7
    %v1377 = vsel %vm509, %v510, %v1376
    %v1378 = vrot.slane %v1309, 7
    %v1379 = vsel %vm509, %v1376, %v1378
    %v1380 = vrot.slane %v1310, 7
    %v1381 = vsel %vm509, %v1378, %v1380
    %v1382 = vrot.slane %v1311, 7
    %v1383 = vsel %vm509, %v1380, %v1382
    %v1388 = vmul.f32 %v1106, %v1377
    %v1389 = vmul.f32 %v1107, %v1379
    %v1390 = vmul.f32 %v1108, %v1381
    %v1391 = vmul.f32 %v1109, %v1383
    %v1392 = vadd.f32 %v1372, %v1388
    %v1393 = vadd.f32 %v1373, %v1389
    %v1394 = vadd.f32 %v1374, %v1390
    %v1395 = vadd.f32 %v1375, %v1391
    %v1396 = vmul.f32 %v1392, %v1086
    %v1397 = vmul.f32 %v1393, %v1087
    %v1398 = vmul.f32 %v1394, %v1088
    %v1399 = vmul.f32 %v1395, %v1089
    %s1400 = scalar_lea.vmem %s1, 96
    %v1401 = vld [vmem:[%s1400] sm:$0xff]
    %v1402 = vld [vmem:[%s1400 + $0x8] sm:$0xff]
    %v1403 = vld [vmem:[%s1400 + $0x10] sm:$0xff]
    %v1404 = vld [vmem:[%s1400 + $0x18] sm:$0xff]
    %v1405 = vmul.f32 %v1401, %v1082
    %v1406 = vmul.f32 %v1402, %v1083
    %v1407 = vmul.f32 %v1403, %v1084
    %v1408 = vmul.f32 %v1404, %v1085
    %v1409 = vadd.f32 %v1396, %v1405
    %v1410 = vadd.f32 %v1397, %v1406
    %v1411 = vadd.f32 %v1398, %v1407
    %v1412 = vadd.f32 %v1399, %v1408
    %v1417 = vrot.slane %v1409, 5
    %v1418 = vrot.slane %v1410, 5
    %v1419 = vsel %vm795, %v1417, %v1418
    %v1420 = vrot.slane %v1411, 5
    %v1421 = vsel %vm795, %v1418, %v1420
    %v1422 = vrot.slane %v1412, 5
    %v1423 = vsel %vm795, %v1420, %v1422
    %v1424 = vsel %vm795, %v1422, %v803
    %v1429 = vmul.f32 %v1094, %v1419
    %v1430 = vmul.f32 %v1095, %v1421
    %v1431 = vmul.f32 %v1096, %v1423
    %v1432 = vmul.f32 %v1097, %v1424
    %v1433 = vadd.f32 %v1090, %v1429
    %v1434 = vadd.f32 %v1091, %v1430
    %v1435 = vadd.f32 %v1092, %v1431
    %v1436 = vadd.f32 %v1093, %v1432
    %v1437 = vrot.slane %v1409, 1
    %v1438 = vrot.slane %v1410, 1
    %v1439 = vsel %vm651, %v1437, %v1438
    %v1440 = vrot.slane %v1411, 1
    %v1441 = vsel %vm651, %v1438, %v1440
    %v1442 = vrot.slane %v1412, 1
    %v1443 = vsel %vm651, %v1440, %v1442
    %v1444 = vsel %vm651, %v1442, %v659
    %v1449 = vmul.f32 %v1098, %v1439
    %v1450 = vmul.f32 %v1099, %v1441
    %v1451 = vmul.f32 %v1100, %v1443
    %v1452 = vmul.f32 %v1101, %v1444
    %v1453 = vadd.f32 %v1433, %v1449
    %v1454 = vadd.f32 %v1434, %v1450
    %v1455 = vadd.f32 %v1435, %v1451
    %v1456 = vadd.f32 %v1436, %v1452
    %v1457 = vrot.slane %v1409, 3
    %v1458 = vsel %vm353, %v354, %v1457
    %v1459 = vrot.slane %v1410, 3
    %v1460 = vsel %vm353, %v1457, %v1459
    %v1461 = vrot.slane %v1411, 3
    %v1462 = vsel %vm353, %v1459, %v1461
    %v1463 = vrot.slane %v1412, 3
    %v1464 = vsel %vm353, %v1461, %v1463
    %v1469 = vmul.f32 %v1102, %v1458
    %v1470 = vmul.f32 %v1103, %v1460
    %v1471 = vmul.f32 %v1104, %v1462
    %v1472 = vmul.f32 %v1105, %v1464
    %v1473 = vadd.f32 %v1453, %v1469
    %v1474 = vadd.f32 %v1454, %v1470
    %v1475 = vadd.f32 %v1455, %v1471
    %v1476 = vadd.f32 %v1456, %v1472
    %v1477 = vrot.slane %v1409, 7
    %v1478 = vsel %vm509, %v510, %v1477
    %v1479 = vrot.slane %v1410, 7
    %v1480 = vsel %vm509, %v1477, %v1479
    %v1481 = vrot.slane %v1411, 7
    %v1482 = vsel %vm509, %v1479, %v1481
    %v1483 = vrot.slane %v1412, 7
    %v1484 = vsel %vm509, %v1481, %v1483
    %v1489 = vmul.f32 %v1106, %v1478
    %v1490 = vmul.f32 %v1107, %v1480
    %v1491 = vmul.f32 %v1108, %v1482
    %v1492 = vmul.f32 %v1109, %v1484
    %v1493 = vadd.f32 %v1473, %v1489
    %v1494 = vadd.f32 %v1474, %v1490
    %v1495 = vadd.f32 %v1475, %v1491
    %v1496 = vadd.f32 %v1476, %v1492
    %v1497 = vmul.f32 %v1493, %v1086
    %v1498 = vmul.f32 %v1494, %v1087
    %v1499 = vmul.f32 %v1495, %v1088
    %v1500 = vmul.f32 %v1496, %v1089
    %s1501 = scalar_lea.vmem %s1, 128
    %v1502 = vld [vmem:[%s1501] sm:$0xff]
    %v1503 = vld [vmem:[%s1501 + $0x8] sm:$0xff]
    %v1504 = vld [vmem:[%s1501 + $0x10] sm:$0xff]
    %v1505 = vld [vmem:[%s1501 + $0x18] sm:$0xff]
    %v1506 = vmul.f32 %v1502, %v1082
    %v1507 = vmul.f32 %v1503, %v1083
    %v1508 = vmul.f32 %v1504, %v1084
    %v1509 = vmul.f32 %v1505, %v1085
    %v1510 = vadd.f32 %v1497, %v1506
    %v1511 = vadd.f32 %v1498, %v1507
    %v1512 = vadd.f32 %v1499, %v1508
    %v1513 = vadd.f32 %v1500, %v1509
    %v1518 = vrot.slane %v1510, 5
    %v1519 = vrot.slane %v1511, 5
    %v1520 = vsel %vm795, %v1518, %v1519
    %v1521 = vrot.slane %v1512, 5
    %v1522 = vsel %vm795, %v1519, %v1521
    %v1523 = vrot.slane %v1513, 5
    %v1524 = vsel %vm795, %v1521, %v1523
    %v1525 = vsel %vm795, %v1523, %v803
    %v1530 = vmul.f32 %v1094, %v1520
    %v1531 = vmul.f32 %v1095, %v1522
    %v1532 = vmul.f32 %v1096, %v1524
    %v1533 = vmul.f32 %v1097, %v1525
    %v1534 = vadd.f32 %v1090, %v1530
    %v1535 = vadd.f32 %v1091, %v1531
    %v1536 = vadd.f32 %v1092, %v1532
    %v1537 = vadd.f32 %v1093, %v1533
    %v1538 = vrot.slane %v1510, 1
    %v1539 = vrot.slane %v1511, 1
    %v1540 = vsel %vm651, %v1538, %v1539
    %v1541 = vrot.slane %v1512, 1
    %v1542 = vsel %vm651, %v1539, %v1541
    %v1543 = vrot.slane %v1513, 1
    %v1544 = vsel %vm651, %v1541, %v1543
    %v1545 = vsel %vm651, %v1543, %v659
    %v1550 = vmul.f32 %v1098, %v1540
    %v1551 = vmul.f32 %v1099, %v1542
    %v1552 = vmul.f32 %v1100, %v1544
    %v1553 = vmul.f32 %v1101, %v1545
    %v1554 = vadd.f32 %v1534, %v1550
    %v1555 = vadd.f32 %v1535, %v1551
    %v1556 = vadd.f32 %v1536, %v1552
    %v1557 = vadd.f32 %v1537, %v1553
    %v1558 = vrot.slane %v1510, 3
    %v1559 = vsel %vm353, %v354, %v1558
    %v1560 = vrot.slane %v1511, 3
    %v1561 = vsel %vm353, %v1558, %v1560
    %v1562 = vrot.slane %v1512, 3
    %v1563 = vsel %vm353, %v1560, %v1562
    %v1564 = vrot.slane %v1513, 3
    %v1565 = vsel %vm353, %v1562, %v1564
    %v1570 = vmul.f32 %v1102, %v1559
    %v1571 = vmul.f32 %v1103, %v1561
    %v1572 = vmul.f32 %v1104, %v1563
    %v1573 = vmul.f32 %v1105, %v1565
    %v1574 = vadd.f32 %v1554, %v1570
    %v1575 = vadd.f32 %v1555, %v1571
    %v1576 = vadd.f32 %v1556, %v1572
    %v1577 = vadd.f32 %v1557, %v1573
    %v1578 = vrot.slane %v1510, 7
    %v1579 = vsel %vm509, %v510, %v1578
    %v1580 = vrot.slane %v1511, 7
    %v1581 = vsel %vm509, %v1578, %v1580
    %v1582 = vrot.slane %v1512, 7
    %v1583 = vsel %vm509, %v1580, %v1582
    %v1584 = vrot.slane %v1513, 7
    %v1585 = vsel %vm509, %v1582, %v1584
    %v1590 = vmul.f32 %v1106, %v1579
    %v1591 = vmul.f32 %v1107, %v1581
    %v1592 = vmul.f32 %v1108, %v1583
    %v1593 = vmul.f32 %v1109, %v1585
    %v1594 = vadd.f32 %v1574, %v1590
    %v1595 = vadd.f32 %v1575, %v1591
    %v1596 = vadd.f32 %v1576, %v1592
    %v1597 = vadd.f32 %v1577, %v1593
    %v1598 = vmul.f32 %v1594, %v1086
    %v1599 = vmul.f32 %v1595, %v1087
    %v1600 = vmul.f32 %v1596, %v1088
    %v1601 = vmul.f32 %v1597, %v1089
    %s1602 = scalar_lea.vmem %s1, 160
    %v1603 = vld [vmem:[%s1602] sm:$0xff]
    %v1604 = vld [vmem:[%s1602 + $0x8] sm:$0xff]
    %v1605 = vld [vmem:[%s1602 + $0x10] sm:$0xff]
    %v1606 = vld [vmem:[%s1602 + $0x18] sm:$0xff]
    %v1607 = vmul.f32 %v1603, %v1082
    %v1608 = vmul.f32 %v1604, %v1083
    %v1609 = vmul.f32 %v1605, %v1084
    %v1610 = vmul.f32 %v1606, %v1085
    %v1611 = vadd.f32 %v1598, %v1607
    %v1612 = vadd.f32 %v1599, %v1608
    %v1613 = vadd.f32 %v1600, %v1609
    %v1614 = vadd.f32 %v1601, %v1610
    %v1615 = vld [vmem:[%s3] sm:$0xff]
    %v1616 = vld [vmem:[%s3 + $0x8] sm:$0xff]
    %v1617 = vld [vmem:[%s3 + $0x10] sm:$0xff]
    %v1618 = vld [vmem:[%s3 + $0x18] sm:$0xff]
    %s1619 = sld [smem:[#allocation6]]
    %v1624 = vrot.slane %v1611, 2
    %v1625 = vsel %vm299, %v300, %v1624
    %v1626 = vrot.slane %v1612, 2
    %v1627 = vsel %vm299, %v1624, %v1626
    %v1628 = vrot.slane %v1613, 2
    %v1629 = vsel %vm299, %v1626, %v1628
    %v1630 = vrot.slane %v1614, 2
    %v1631 = vsel %vm299, %v1628, %v1630
    %v1636 = vmul.f32 %v77, %v1625
    %v1637 = vmul.f32 %v82, %v1627
    %v1638 = vmul.f32 %v87, %v1629
    %v1639 = vmul.f32 %v92, %v1631
    %v1640 = vstv %s1619
    %v1641 = vmul.f32 %v1640, %v1636
    %v1642 = vmul.f32 %v1640, %v1637
    %v1643 = vmul.f32 %v1640, %v1638
    %v1644 = vmul.f32 %v1640, %v1639
    %1646 = vset.pattern.permute.xlu0 0
    %1647 = vperm.xlu0 %1646, %v1615
    %v1648 = vpop.permute.xlu0 %1647
    %1651 = vset.pattern.permute.xlu0 0
    %1652 = vperm.xlu0 %1651, %v1616
    %v1653 = vpop.permute.xlu0 %1652
    %1656 = vset.pattern.permute.xlu0 0
    %1657 = vperm.xlu0 %1656, %v1617
    %v1658 = vpop.permute.xlu0 %1657
    %1661 = vset.pattern.permute.xlu0 0
    %1662 = vperm.xlu0 %1661, %v1618
    %v1663 = vpop.permute.xlu0 %1662
    %v1665 = vadd.f32 %v1648, %v1641
    %v1666 = vadd.f32 %v1653, %v1642
    %v1667 = vadd.f32 %v1658, %v1643
    %v1668 = vadd.f32 %v1663, %v1644
    %s1669 = sld [smem:[#allocation6 + $0x1]]
    %v1670 = vrot.slane %v1611, 3
    %v1671 = vsel %vm353, %v354, %v1670
    %v1672 = vrot.slane %v1612, 3
    %v1673 = vsel %vm353, %v1670, %v1672
    %v1674 = vrot.slane %v1613, 3
    %v1675 = vsel %vm353, %v1672, %v1674
    %v1676 = vrot.slane %v1614, 3
    %v1677 = vsel %vm353, %v1674, %v1676
    %v1682 = vmul.f32 %v102, %v1671
    %v1683 = vmul.f32 %v107, %v1673
    %v1684 = vmul.f32 %v112, %v1675
    %v1685 = vmul.f32 %v117, %v1677
    %v1686 = vstv %s1669
    %v1687 = vmul.f32 %v1686, %v1682
    %v1688 = vmul.f32 %v1686, %v1683
    %v1689 = vmul.f32 %v1686, %v1684
    %v1690 = vmul.f32 %v1686, %v1685
    %v1691 = vadd.f32 %v1665, %v1687
    %v1692 = vadd.f32 %v1666, %v1688
    %v1693 = vadd.f32 %v1667, %v1689
    %v1694 = vadd.f32 %v1668, %v1690
    %s1695 = sld [smem:[#allocation6 + $0x2]]
    %v1696 = vrot.slane %v1611, 4
    %v1697 = vsel %vm431, %v432, %v1696
    %v1698 = vrot.slane %v1612, 4
    %v1699 = vsel %vm431, %v1696, %v1698
    %v1700 = vrot.slane %v1613, 4
    %v1701 = vsel %vm431, %v1698, %v1700
    %v1702 = vrot.slane %v1614, 4
    %v1703 = vsel %vm431, %v1700, %v1702
    %v1708 = vmul.f32 %v127, %v1697
    %v1709 = vmul.f32 %v132, %v1699
    %v1710 = vmul.f32 %v137, %v1701
    %v1711 = vmul.f32 %v142, %v1703
    %v1712 = vstv %s1695
    %v1713 = vmul.f32 %v1712, %v1708
    %v1714 = vmul.f32 %v1712, %v1709
    %v1715 = vmul.f32 %v1712, %v1710
    %v1716 = vmul.f32 %v1712, %v1711
    %v1717 = vadd.f32 %v1691, %v1713
    %v1718 = vadd.f32 %v1692, %v1714
    %v1719 = vadd.f32 %v1693, %v1715
    %v1720 = vadd.f32 %v1694, %v1716
    %s1721 = sld [smem:[#allocation6 + $0x3]]
    %v1722 = vrot.slane %v1611, 7
    %v1723 = vsel %vm509, %v510, %v1722
    %v1724 = vrot.slane %v1612, 7
    %v1725 = vsel %vm509, %v1722, %v1724
    %v1726 = vrot.slane %v1613, 7
    %v1727 = vsel %vm509, %v1724, %v1726
    %v1728 = vrot.slane %v1614, 7
    %v1729 = vsel %vm509, %v1726, %v1728
    %v1734 = vmul.f32 %v152, %v1723
    %v1735 = vmul.f32 %v157, %v1725
    %v1736 = vmul.f32 %v162, %v1727
    %v1737 = vmul.f32 %v167, %v1729
    %v1738 = vstv %s1721
    %v1739 = vmul.f32 %v1738, %v1734
    %v1740 = vmul.f32 %v1738, %v1735
    %v1741 = vmul.f32 %v1738, %v1736
    %v1742 = vmul.f32 %v1738, %v1737
    %v1743 = vadd.f32 %v1717, %v1739
    %v1744 = vadd.f32 %v1718, %v1740
    %v1745 = vadd.f32 %v1719, %v1741
    %v1746 = vadd.f32 %v1720, %v1742
    %s1747 = sld [smem:[#allocation6 + $0x4]]
    %v1748 = vmul.f32 %v177, %v1611
    %v1749 = vmul.f32 %v182, %v1612
    %v1750 = vmul.f32 %v187, %v1613
    %v1751 = vmul.f32 %v192, %v1614
    %v1752 = vstv %s1747
    %v1753 = vmul.f32 %v1752, %v1748
    %v1754 = vmul.f32 %v1752, %v1749
    %v1755 = vmul.f32 %v1752, %v1750
    %v1756 = vmul.f32 %v1752, %v1751
    %v1757 = vadd.f32 %v1743, %v1753
    %v1758 = vadd.f32 %v1744, %v1754
    %v1759 = vadd.f32 %v1745, %v1755
    %v1760 = vadd.f32 %v1746, %v1756
    %s1761 = sld [smem:[#allocation6 + $0x5]]
    %v1762 = vrot.slane %v1611, 1
    %v1763 = vrot.slane %v1612, 1
    %v1764 = vsel %vm651, %v1762, %v1763
    %v1765 = vrot.slane %v1613, 1
    %v1766 = vsel %vm651, %v1763, %v1765
    %v1767 = vrot.slane %v1614, 1
    %v1768 = vsel %vm651, %v1765, %v1767
    %v1769 = vsel %vm651, %v1767, %v659
    %v1774 = vmul.f32 %v202, %v1764
    %v1775 = vmul.f32 %v207, %v1766
    %v1776 = vmul.f32 %v212, %v1768
    %v1777 = vmul.f32 %v217, %v1769
    %v1778 = vstv %s1761
    %v1779 = vmul.f32 %v1778, %v1774
    %v1780 = vmul.f32 %v1778, %v1775
    %v1781 = vmul.f32 %v1778, %v1776
    %v1782 = vmul.f32 %v1778, %v1777
    %v1783 = vadd.f32 %v1757, %v1779
    %v1784 = vadd.f32 %v1758, %v1780
    %v1785 = vadd.f32 %v1759, %v1781
    %v1786 = vadd.f32 %v1760, %v1782
    %s1787 = sld [smem:[#allocation6 + $0x6]]
    %v1788 = vsel %vm431, %v1702, %v432
    %v1790 = vmul.f32 %v227, %v1699
    %v1791 = vmul.f32 %v232, %v1701
    %v1792 = vmul.f32 %v237, %v1703
    %v1793 = vmul.f32 %v242, %v1788
    %v1794 = vstv %s1787
    %v1795 = vmul.f32 %v1794, %v1790
    %v1796 = vmul.f32 %v1794, %v1791
    %v1797 = vmul.f32 %v1794, %v1792
    %v1798 = vmul.f32 %v1794, %v1793
    %v1799 = vadd.f32 %v1783, %v1795
    %v1800 = vadd.f32 %v1784, %v1796
    %v1801 = vadd.f32 %v1785, %v1797
    %v1802 = vadd.f32 %v1786, %v1798
    %s1803 = sld [smem:[#allocation6 + $0x7]]
    %v1804 = vrot.slane %v1611, 5
    %v1805 = vrot.slane %v1612, 5
    %v1806 = vsel %vm795, %v1804, %v1805
    %v1807 = vrot.slane %v1613, 5
    %v1808 = vsel %vm795, %v1805, %v1807
    %v1809 = vrot.slane %v1614, 5
    %v1810 = vsel %vm795, %v1807, %v1809
    %v1811 = vsel %vm795, %v1809, %v803
    %v1816 = vmul.f32 %v252, %v1806
    %v1817 = vmul.f32 %v257, %v1808
    %v1818 = vmul.f32 %v262, %v1810
    %v1819 = vmul.f32 %v267, %v1811
    %v1820 = vstv %s1803
    %v1821 = vmul.f32 %v1820, %v1816
    %v1822 = vmul.f32 %v1820, %v1817
    %v1823 = vmul.f32 %v1820, %v1818
    %v1824 = vmul.f32 %v1820, %v1819
    %v1825 = vadd.f32 %v1799, %v1821
    %v1826 = vadd.f32 %v1800, %v1822
    %v1827 = vadd.f32 %v1801, %v1823
    %v1828 = vadd.f32 %v1802, %v1824
    %s1829 = sld [smem:[#allocation6 + $0x8]]
    %v1830 = vrot.slane %v1611, 6
    %v1831 = vrot.slane %v1612, 6
    %v1832 = vsel %vm873, %v1830, %v1831
    %v1833 = vrot.slane %v1613, 6
    %v1834 = vsel %vm873, %v1831, %v1833
    %v1835 = vrot.slane %v1614, 6
    %v1836 = vsel %vm873, %v1833, %v1835
    %v1837 = vsel %vm873, %v1835, %v881
    %v1842 = vmul.f32 %v277, %v1832
    %v1843 = vmul.f32 %v282, %v1834
    %v1844 = vmul.f32 %v287, %v1836
    %v1845 = vmul.f32 %v292, %v1837
    %v1846 = vstv %s1829
    %v1847 = vmul.f32 %v1846, %v1842
    %v1848 = vmul.f32 %v1846, %v1843
    %v1849 = vmul.f32 %v1846, %v1844
    %v1850 = vmul.f32 %v1846, %v1845
    %v1851 = vadd.f32 %v1825, %v1847
    %v1852 = vadd.f32 %v1826, %v1848
    %v1853 = vadd.f32 %v1827, %v1849
    %v1854 = vadd.f32 %v1828, %v1850
    %1855 = vst [vmem:[%s7] sm:$0xff] %v1851
    %1856 = vst [vmem:[%s7 + $0x8] sm:$0xff] %v1852
    %1857 = vst [vmem:[%s7 + $0x10] sm:$0xff] %v1853
    %1858 = vst [vmem:[%s7 + $0x18] sm:$0xff] %v1854
    // Predicated region
    $region42: #{_forward_impl.1} parent=1 // pred_check
      _
    $region43: #{_forward_impl.1} parent=1 // pred_check_branch
      %1860 = sbr.rel (0) target = $region45
    $region44: #{_forward_impl.1} parent=1 // pred_region
      _
    $region45: #{_forward_impl.1} parent=1 // pred_fallthru
      _
    // Predicated region
    $region46: #{_forward_impl.1} parent=1 // pred_check
      _
    $region47: #{_forward_impl.1} parent=1 // pred_check_branch
      %1862 = sbr.rel (0) target = $region49
    $region48: #{_forward_impl.1} parent=1 // pred_region
      _
    $region49: #{_forward_impl.1} parent=1 // pred_fallthru
      _
    // Predicated region
    $region50: #{_forward_impl.1} parent=1 // pred_check
      _
    $region51: #{_forward_impl.1} parent=1 // pred_check_branch
      %1864 = sbr.rel (0) target = $region53
    $region52: #{_forward_impl.1} parent=1 // pred_region
      _
    $region53: #{_forward_impl.1} parent=1 // pred_fallthru
      _
    // Predicated region
    $region54: #{_forward_impl.1} parent=1 // pred_check
      _
    $region55: #{_forward_impl.1} parent=1 // pred_check_branch
      %1866 = sbr.rel (0) target = $region57
    $region56: #{_forward_impl.1} parent=1 // pred_region
      _
    $region57: #{_forward_impl.1} parent=1 // pred_fallthru
      _
    // Predicated region
    $region58: #{_forward_impl.1} parent=1 // pred_check
      _
    $region59: #{_forward_impl.1} parent=1 // pred_check_branch
      %1868 = sbr.rel (0) target = $region61
    $region60: #{_forward_impl.1} parent=1 // pred_region
      _
    $region61: #{_forward_impl.1} parent=1 // pred_fallthru
      _
    // Predicated region
    $region62: #{_forward_impl.1} parent=1 // pred_check
      _
    $region63: #{_forward_impl.1} parent=1 // pred_check_branch
      %1870 = sbr.rel (0) target = $region65
    $region64: #{_forward_impl.1} parent=1 // pred_region
      _
    $region65: #{_forward_impl.1} parent=1 // pred_fallthru
      _
    // Predicated region
    $region66: #{_forward_impl.1} parent=1 // pred_check
      _
    $region67: #{_forward_impl.1} parent=1 // pred_check_branch
      %1872 = sbr.rel (0) target = $region69
    $region68: #{_forward_impl.1} parent=1 // pred_region
      _
    $region69: #{_forward_impl.1} parent=1 // pred_fallthru
      _
    // Predicated region
    $region70: #{_forward_impl.1} parent=1 // pred_check
      _
    $region71: #{_forward_impl.1} parent=1 // pred_check_branch
      %1874 = sbr.rel (0) target = $region73
    $region72: #{_forward_impl.1} parent=1 // pred_region
      _
    $region73: #{_forward_impl.1} parent=1 // pred_fallthru
      _
    %1875 = vsyncpa [#allocation3], 1
    %1876 = vsyncpa [#allocation5], 1

</llo_original>
